<compile_context>
chip_gen: v5e
topology: v5e:2x2
jax: 0.10.0
libtpu: 0.0.40
codegen_flags: <defaults>
</compile_context>

<pallas_src>
import numpy as np
import jax
import jax.numpy as jnp
from jax import lax
from jax.experimental import pallas as pl
from jax.experimental.pallas import tpu as pltpu  # noqa: F401  (no scratch/DMA needed in this kernel)

# ---- static problem sizes (test shape of the module) ------------------------------------------
B, CIN, H, W = 2, 4, 16, 16
COUT = 8
KS, PAD = 3, 1
REDUCTION = 16
SA = 4                         # Selector.spatial_attention
IN_CH = COUT * SA * SA         # 128
HID = IN_CH // REDUCTION       # 8
EPS = 1e-5
NEG_SLOPE = 0.01               # nn.LeakyReLU default

ROWS = B * H                   # 32  kernel row axis:  r = b*H + y
XC = W * CIN                   # 64  input lane axis:  lane = x*CIN + c
XO = W * COUT                  # 128 per-conv output:  lane = x*COUT + o
BCY = B * SA                   # 8   pooled rows:      b*SA + cy
SEL = SA * COUT                # 32  selector cell block (cx*COUT + c)


def _leaky(v):
    return jnp.where(v > 0, v, NEG_SLOPE * v)


# ---- constant selection / pooling / upsample matrices (pure numpy, hoisted out of the kernel) --
def _np_constants():
    r = np.arange(ROWS)
    b_r = r // H
    cy_r = (r % H) // (H // SA)

    # per-batch row-sum selector for the norm statistics            (B, ROWS)
    selb = (np.arange(B)[:, None] == b_r[None, :]).astype(np.float32)

    # lane collapse of the [x | x*x] row-sums to per-channel sums   (2*XC, 2*CIN)
    l = np.arange(2 * XC)
    lcol = ((l[:, None] // XC) * CIN + (l[:, None] % CIN)
            == np.arange(2 * CIN)[None, :]).astype(np.float32)

    # spread per-channel (scale | shift) over the x-tiled lanes     (2*CIN, 2*XC)
    k = np.arange(2 * CIN)
    jj = np.arange(2 * XC)
    cspread = ((jj[None, :] // XC == k[:, None] // CIN) &
               (jj[None, :] % CIN == k[:, None] % CIN)).astype(np.float32)

    # batch -> rows expansion                                       (ROWS, B)
    ufull = (b_r[:, None] == np.arange(B)[None, :]).astype(np.float32)

    # row-shift matrices for the dy=0 (y-1) and dy=2 (y+1) conv taps, stacked  (2*ROWS, ROWS)
    s0 = np.zeros((ROWS, ROWS), np.float32)
    s2 = np.zeros((ROWS, ROWS), np.float32)
    for rr in range(ROWS):
        if rr % H != 0:
            s0[rr, rr - 1] = 1.0       # same image, zero-pad + batch boundary handled by the zeros
        if rr % H != H - 1:
            s2[rr, rr + 1] = 1.0
    sstack = np.concatenate([s0, s2], axis=0)

    # adaptive 4x4 avg-pool, row part: (b,y) rows -> (b,cy) rows, mean over y-block   (BCY, ROWS)
    q = np.arange(BCY)
    prow = ((b_r[None, :] == q[:, None] // SA) &
            (cy_r[None, :] == q[:, None] % SA)).astype(np.float32) / (H // SA)

    # pool lanes (x*8+c) -> cell lanes (cx*8+c), replicated into every 32-lane block  (XO, IN_CH)
    lx = np.arange(XO)
    jm = np.arange(IN_CH)
    qe = ((jm[None, :] % SEL ==
           (lx[:, None] // SEL) * COUT + (lx[:, None] % COUT))
          ).astype(np.float32) / (W // SA)

    # keep only this row's cy block of lanes; then sum the 4 cy rows of each batch
    dmask2 = (jm[None, :] // SEL == (q[:, None] % SA)).astype(np.float32)        # (BCY, IN_CH)
    bsum = (np.arange(B)[:, None] == q[None, :] // SA).astype(np.float32)        # (B, BCY)

    # attention upsample: per-row cy lane mask and cell->pixel lane expansion
    j2 = np.arange(2 * IN_CH)
    dmask32 = ((j2[None, :] % IN_CH) // SEL == cy_r[:, None]).astype(np.float32)  # (ROWS, 2*IN_CH)
    js = np.arange(2 * IN_CH)[:, None]
    jt = np.arange(2 * XO)[None, :]
    uexp = ((js // IN_CH == jt // XO) &
            (js % COUT == jt % COUT) &
            ((js % SEL) // COUT == (jt % XO) // SEL)).astype(np.float32)          # (2*IN_CH, 2*XO)

    return dict(selb=selb, lcol=lcol, cspread=cspread, ufull=ufull, sstack=sstack,
                prow=prow, qe=qe, dmask2=dmask2, bsum=bsum, dmask32=dmask32, uexp=uexp)


_CONST = _np_constants()
# x_out = x_in + 1 - dx  (dx band for the lane-banded conv weights)
_BANDS = [np.eye(W, k=1 - dx, dtype=np.float32) for dx in range(KS)]


# --------------------------------- fully fused kernel -------------------------------------------
def selective_conv_kernel(x_ref, selb_ref, lcol_ref, cspread_ref, ufull_ref,
                          sstack_ref, wstack_ref, bconv_ref,
                          prow_ref, qe_ref, dmask2_ref, bsum_ref,
                          wfc_ref, wa_ref, ba_ref, dmask32_ref, uexp_ref,
                          out_ref):
    f32 = jnp.float32
    dot = lambda a, b: jnp.dot(a, b, preferred_element_type=f32)

    x = x_ref[...]                                             # (32, 64)  lane = x*CIN + c

    # ---- BatchNorm / InstanceNorm statistics: ONE fused contraction over [x | x*x] ----
    xcat = jnp.concatenate([x, x * x], axis=1)                 # (32, 128)
    stats = dot(dot(selb_ref[...], xcat), lcol_ref[...])       # (B, 8) = [sum x | sum x^2] per (b,c)
    npix = float(H * W)
    s1, s2 = stats[:, :CIN], stats[:, CIN:]
    mu_in = s1 / npix
    var_in = jnp.maximum(s2 / npix - mu_in * mu_in, 0.0)       # guard E[x^2]-E[x]^2 cancellation
    s1b = jnp.sum(s1, axis=0, keepdims=True)
    s2b = jnp.sum(s2, axis=0, keepdims=True)
    mu_bn = s1b / (npix * B)
    var_bn = jnp.maximum(s2b / (npix * B) - mu_bn * mu_bn, 0.0)
    inv_in = lax.rsqrt(var_in + EPS)
    inv_bn = lax.rsqrt(var_bn + EPS)

    # normalization as per-lane affine maps (scale | shift), spread over the x-tiled lanes
    bn_map = dot(jnp.concatenate([inv_bn, -mu_bn * inv_bn], axis=1), cspread_ref[...])   # (1, 128)
    in_map = dot(ufull_ref[...],
                 dot(jnp.concatenate([inv_in, -mu_in * inv_in], axis=1), cspread_ref[...]))  # (32, 128)
    f = _leaky(x * bn_map[:, :XC] + bn_map[:, XC:])
    s = _leaky(x * in_map[:, :XC] + in_map[:, XC:])
    fs = jnp.concatenate([f, s], axis=1)                       # (32, 128)  [f lanes | s lanes]

    # ---- both 3x3 convs: one row-shift matmul (dy taps) + one banded weight matmul (dx taps) ----
    sfs = dot(sstack_ref[...], fs)                             # (64, 128) = [rows y-1 ; rows y+1]
    catfs = jnp.concatenate([fs, sfs[:ROWS], sfs[ROWS:]], axis=1)          # (32, 384)
    oo = dot(catfs, wstack_ref[...]) + bconv_ref[...]          # (32, 256) = [conv1 | conv2]
    o1, o2 = oo[:, :XO], oo[:, XO:]
    osum = o1 + o2                                             # (32, 128)  lane = x*COUT + o

    # ---- Selector: 4x4 adaptive avg-pool -> fc -> fused logit heads -> 2-way softmax ----
    t = dot(prow_ref[...], osum)                               # (8, 128)  rows (b, cy)
    t = dot(t, qe_ref[...]) * dmask2_ref[...]                  # (8, 128)  pooled cells in own cy block
    y_sel = dot(bsum_ref[...], t)                              # (2, 128)  lane = cy*32 + cx*8 + c
    hid = jnp.maximum(dot(y_sel, wfc_ref[...]), 0.0)           # (2, 8)
    a12 = dot(hid, wa_ref[...]) + ba_ref[...]                  # (2, 256) = [att1 logits | att2 logits]
    a1, a2 = a12[:, :IN_CH], a12[:, IN_CH:]
    m = jnp.maximum(a1, a2)
    e1 = jnp.exp(a1 - m)
    e2 = jnp.exp(a2 - m)
    inv = pl.reciprocal(e1 + e2, approx=True)
    att12 = jnp.concatenate([e1 * inv, e2 * inv], axis=1)      # (2, 256)

    # ---- nearest-neighbour upsample of both attentions (one matmul) + final combine ----
    att_full = dot(dot(ufull_ref[...], att12) * dmask32_ref[...], uexp_ref[...])   # (32, 256)
    prod = oo * att_full
    out_ref[...] = prod[:, :XO] + prod[:, XO:]                 # (32, 128) lane-dense store


# --------------------------------- wrapper -------------------------------------------------------
def _build_wstack(w1, w2):
    """Banded block weight for both convs: rows [dy=1|dy=0|dy=2] x [f lanes | s lanes],
    cols [conv1 (x*COUT+o) | conv2]."""
    zero = jnp.zeros((XC, XO), jnp.float32)
    blocks = []
    for dy in (1, 0, 2):                       # order must match catfs = [fs, y-1 rows, y+1 rows]
        fband = sum(jnp.kron(jnp.asarray(_BANDS[dx]), w1[:, :, dy, dx].T) for dx in range(KS))
        sband = sum(jnp.kron(jnp.asarray(_BANDS[dx]), w2[:, :, dy, dx].T) for dx in range(KS))
        wd = jnp.concatenate([jnp.concatenate([fband, zero], axis=1),
                              jnp.concatenate([zero, sband], axis=1)], axis=0)   # (128, 256)
        blocks.append(wd)
    return jnp.concatenate(blocks, axis=0)                                       # (384, 256)


def _prep_selector(wfc, wa1, ba1, wa2, ba2):
    # kernel lane packing for the selector vector: j = cy*32 + cx*8 + c  (PyTorch flat: c*16+cy*4+cx)
    wfc_k = jnp.transpose(wfc.reshape(HID, COUT, SA, SA), (2, 3, 1, 0)).reshape(IN_CH, HID)
    wa1_k = jnp.transpose(wa1.reshape(COUT, SA, SA, HID), (3, 1, 2, 0)).reshape(HID, IN_CH)
    wa2_k = jnp.transpose(wa2.reshape(COUT, SA, SA, HID), (3, 1, 2, 0)).reshape(HID, IN_CH)
    ba1_k = jnp.transpose(ba1.reshape(COUT, SA, SA), (1, 2, 0)).reshape(1, IN_CH)
    ba2_k = jnp.transpose(ba2.reshape(COUT, SA, SA), (1, 2, 0)).reshape(1, IN_CH)
    return wfc_k, jnp.concatenate([wa1_k, wa2_k], axis=1), jnp.concatenate([ba1_k, ba2_k], axis=1)


@jax.jit
def selective_conv_forward(x_nchw, params):
    (w1, b1, w2, b2, wfc, wa1, ba1, wa2, ba2) = params
    wstack = _build_wstack(w1, w2)                                               # (384, 256)
    bconv = jnp.concatenate([jnp.tile(b1, W), jnp.tile(b2, W)]).reshape(1, 2 * XO)
    wfc_k, wa_k, ba_k = _prep_selector(wfc, wa1, ba1, wa2, ba2)

    # lane-dense input slab: row = b*H + y, lane = x*CIN + c
    x = jnp.transpose(x_nchw, (0, 2, 3, 1)).reshape(ROWS, XC)

    c = {k: jnp.asarray(v) for k, v in _CONST.items()}
    out_slab = pl.pallas_call(
        selective_conv_kernel,
        out_shape=jax.ShapeDtypeStruct((ROWS, XO), jnp.float32),
    )(x, c['selb'], c['lcol'], c['cspread'], c['ufull'], c['sstack'],
      wstack, bconv, c['prow'], c['qe'], c['dmask2'], c['bsum'],
      wfc_k, wa_k, ba_k, c['dmask32'], c['uexp'])

    # lane-dense slab -> NCHW (fuses into the XLA program)
    return jnp.transpose(out_slab.reshape(B, H, W, COUT), (0, 3, 1, 2))


# --------------------------------- pure-JAX reference (mirrors the PyTorch module) ---------------
def selective_conv_reference(x, params):
    (w1, b1, w2, b2, wfc, wa1, ba1, wa2, ba2) = params
    mu = jnp.mean(x, axis=(0, 2, 3), keepdims=True)
    var = jnp.mean((x - mu) ** 2, axis=(0, 2, 3), keepdims=True)
    f = _leaky((x - mu) / jnp.sqrt(var + EPS))
    mui = jnp.mean(x, axis=(2, 3), keepdims=True)
    vari = jnp.mean((x - mui) ** 2, axis=(2, 3), keepdims=True)
    s = _leaky((x - mui) / jnp.sqrt(vari + EPS))
    dn = ('NCHW', 'OIHW', 'NCHW')
    out1 = lax.conv_general_dilated(f, w1, (1, 1), ((PAD, PAD), (PAD, PAD)),
                                    dimension_numbers=dn,
                                    precision=lax.Precision.HIGHEST) + b1[None, :, None, None]
    out2 = lax.conv_general_dilated(s, w2, (1, 1), ((PAD, PAD), (PAD, PAD)),
                                    dimension_numbers=dn,
                                    precision=lax.Precision.HIGHEST) + b2[None, :, None, None]
    out = out1 + out2
    pooled = out.reshape(B, COUT, SA, H // SA, SA, W // SA).mean(axis=(3, 5))
    y = pooled.reshape(B, -1)
    hid = jnp.maximum(y @ wfc.T, 0.0)
    a1 = (hid @ wa1.T + ba1).reshape(B, COUT, SA, SA)
    a2 = (hid @ wa2.T + ba2).reshape(B, COUT, SA, SA)
    m = jnp.maximum(a1, a2)
    e1, e2 = jnp.exp(a1 - m), jnp.exp(a2 - m)
    att1 = e1 / (e1 + e2)
    att2 = e2 / (e1 + e2)
    att1 = jnp.repeat(jnp.repeat(att1, H // SA, axis=2), W // SA, axis=3)
    att2 = jnp.repeat(jnp.repeat(att2, H // SA, axis=2), W // SA, axis=3)
    return out1 * att1 + out2 * att2


if __name__ == "__main__":
    key = jax.random.PRNGKey(0)
    ks = jax.random.split(key, 10)
    params = (
        0.1 * jax.random.normal(ks[0], (COUT, CIN, KS, KS), jnp.float32),   # conv1.weight
        0.1 * jax.random.normal(ks[1], (COUT,), jnp.float32),               # conv1.bias
        0.1 * jax.random.normal(ks[2], (COUT, CIN, KS, KS), jnp.float32),   # conv2.weight
        0.1 * jax.random.normal(ks[3], (COUT,), jnp.float32),               # conv2.bias
        0.1 * jax.random.normal(ks[4], (HID, IN_CH), jnp.float32),          # selector.fc[0].weight
        0.1 * jax.random.normal(ks[5], (IN_CH, HID), jnp.float32),          # selector.att_conv1.weight
        0.1 * jax.random.normal(ks[6], (IN_CH,), jnp.float32),              # selector.att_conv1.bias
        0.1 * jax.random.normal(ks[7], (IN_CH, HID), jnp.float32),          # selector.att_conv2.weight
        0.1 * jax.random.normal(ks[8], (IN_CH,), jnp.float32),              # selector.att_conv2.bias
    )
    x = jax.random.normal(ks[9], (B, CIN, H, W), jnp.float32)

    out = selective_conv_forward(x, params)
    jax.block_until_ready(out)

    ref = selective_conv_reference(x, params)
    jax.block_until_ready(ref)
    if not bool(jnp.allclose(out, ref, atol=2e-3, rtol=2e-3)):
        raise AssertionError("Pallas output does not match JAX reference: "
                             f"max abs diff = {float(jnp.max(jnp.abs(out - ref)))}")
    print("KERNEL_OK")
</pallas_src>

<mosaic_0001>
module attributes {stable_mosaic.version = 11 : i64} {
  func.func @selective_conv_kernel(%arg0: memref<32x64xf32, #tpu.memory_space<vmem>>, %arg1: memref<2x32xf32, #tpu.memory_space<vmem>>, %arg2: memref<128x8xf32, #tpu.memory_space<vmem>>, %arg3: memref<8x128xf32, #tpu.memory_space<vmem>>, %arg4: memref<32x2xf32, #tpu.memory_space<vmem>>, %arg5: memref<64x32xf32, #tpu.memory_space<vmem>>, %arg6: memref<384x256xf32, #tpu.memory_space<vmem>>, %arg7: memref<1x256xf32, #tpu.memory_space<vmem>>, %arg8: memref<8x32xf32, #tpu.memory_space<vmem>>, %arg9: memref<128x128xf32, #tpu.memory_space<vmem>>, %arg10: memref<8x128xf32, #tpu.memory_space<vmem>>, %arg11: memref<2x8xf32, #tpu.memory_space<vmem>>, %arg12: memref<128x8xf32, #tpu.memory_space<vmem>>, %arg13: memref<8x256xf32, #tpu.memory_space<vmem>>, %arg14: memref<1x256xf32, #tpu.memory_space<vmem>>, %arg15: memref<32x256xf32, #tpu.memory_space<vmem>>, %arg16: memref<256x256xf32, #tpu.memory_space<vmem>>, %arg17: memref<32x128xf32, #tpu.memory_space<vmem>>) attributes {dimension_semantics = [], scalar_prefetch = 0 : i64, scratch_operands = 0 : i64, tpu.core_type = #tpu.core_type<tc>} {
    %c0 = arith.constant 0 : index
    %c0_0 = arith.constant 0 : index
    %0 = vector.load %arg0[%c0, %c0_0] : memref<32x64xf32, #tpu.memory_space<vmem>>, vector<32x64xf32>
    %1 = arith.mulf %0, %0 : vector<32x64xf32>
    %2 = tpu.concatenate %0, %1 in 1 : vector<32x64xf32>, vector<32x64xf32> -> vector<32x128xf32>
    %c0_1 = arith.constant 0 : index
    %c0_2 = arith.constant 0 : index
    %3 = vector.load %arg1[%c0_1, %c0_2] : memref<2x32xf32, #tpu.memory_space<vmem>>, vector<2x32xf32>
    %cst = arith.constant dense<0.000000e+00> : vector<2x128xf32>
    %4 = tpu.matmul %3, %2, %cst {dimension_numbers = #tpu.dot_dimension_numbers<[1], [0], [0], [1], [0, 0, 1, 1], [], []>} : vector<2x32xf32>, vector<32x128xf32>, vector<2x128xf32> -> vector<2x128xf32>
    %c0_3 = arith.constant 0 : index
    %c0_4 = arith.constant 0 : index
    %5 = vector.load %arg2[%c0_3, %c0_4] : memref<128x8xf32, #tpu.memory_space<vmem>>, vector<128x8xf32>
    %cst_5 = arith.constant dense<0.000000e+00> : vector<2x8xf32>
    %6 = tpu.matmul %4, %5, %cst_5 {dimension_numbers = #tpu.dot_dimension_numbers<[1], [0], [0], [1], [0, 0, 1, 1], [], []>} : vector<2x128xf32>, vector<128x8xf32>, vector<2x8xf32> -> vector<2x8xf32>
    %7 = vector.extract_strided_slice %6 {offsets = [0, 0], sizes = [2, 4], strides = [1, 1]} : vector<2x8xf32> to vector<2x4xf32>
    %8 = vector.extract_strided_slice %6 {offsets = [0, 4], sizes = [2, 4], strides = [1, 1]} : vector<2x8xf32> to vector<2x4xf32>
    %cst_6 = arith.constant 2.560000e+02 : f32
    %9 = vector.broadcast %cst_6 : f32 to vector<2x4xf32>
    %10 = arith.divf %7, %9 : vector<2x4xf32>
    %cst_7 = arith.constant 2.560000e+02 : f32
    %11 = vector.broadcast %cst_7 : f32 to vector<2x4xf32>
    %12 = arith.divf %8, %11 : vector<2x4xf32>
    %13 = arith.mulf %10, %10 : vector<2x4xf32>
    %14 = arith.subf %12, %13 : vector<2x4xf32>
    %cst_8 = arith.constant 0.000000e+00 : f32
    %15 = vector.broadcast %cst_8 : f32 to vector<2x4xf32>
    %16 = arith.maximumf %14, %15 : vector<2x4xf32>
    %cst_9 = arith.constant dense<0.000000e+00> : vector<4xf32>
    %17 = vector.multi_reduction <add>, %7, %cst_9 [0] : vector<2x4xf32> to vector<4xf32>
    %18 = vector.shape_cast %17 : vector<4xf32> to vector<1x4xf32>
    %cst_10 = arith.constant dense<0.000000e+00> : vector<4xf32>
    %19 = vector.multi_reduction <add>, %8, %cst_10 [0] : vector<2x4xf32> to vector<4xf32>
    %20 = vector.shape_cast %19 : vector<4xf32> to vector<1x4xf32>
    %cst_11 = arith.constant 5.120000e+02 : f32
    %21 = vector.broadcast %cst_11 : f32 to vector<1x4xf32>
    %22 = arith.divf %18, %21 : vector<1x4xf32>
    %cst_12 = arith.constant 5.120000e+02 : f32
    %23 = vector.broadcast %cst_12 : f32 to vector<1x4xf32>
    %24 = arith.divf %20, %23 : vector<1x4xf32>
    %25 = arith.mulf %22, %22 : vector<1x4xf32>
    %26 = arith.subf %24, %25 : vector<1x4xf32>
    %cst_13 = arith.constant 0.000000e+00 : f32
    %27 = vector.broadcast %cst_13 : f32 to vector<1x4xf32>
    %28 = arith.maximumf %26, %27 : vector<1x4xf32>
    %cst_14 = arith.constant 9.99999974E-6 : f32
    %29 = vector.broadcast %cst_14 : f32 to vector<2x4xf32>
    %30 = arith.addf %16, %29 : vector<2x4xf32>
    %31 = math.rsqrt %30 : vector<2x4xf32>
    %cst_15 = arith.constant 9.99999974E-6 : f32
    %32 = vector.broadcast %cst_15 : f32 to vector<1x4xf32>
    %33 = arith.addf %28, %32 : vector<1x4xf32>
    %34 = math.rsqrt %33 : vector<1x4xf32>
    %cst_16 = arith.constant 0.000000e+00 : f32
    %35 = vector.broadcast %cst_16 : f32 to vector<1x4xf32>
    %36 = arith.subf %35, %22 : vector<1x4xf32>
    %37 = arith.mulf %36, %34 : vector<1x4xf32>
    %38 = tpu.concatenate %34, %37 in 1 : vector<1x4xf32>, vector<1x4xf32> -> vector<1x8xf32>
    %c0_17 = arith.constant 0 : index
    %c0_18 = arith.constant 0 : index
    %39 = vector.load %arg3[%c0_17, %c0_18] : memref<8x128xf32, #tpu.memory_space<vmem>>, vector<8x128xf32>
    %cst_19 = arith.constant dense<0.000000e+00> : vector<1x128xf32>
    %40 = tpu.matmul %38, %39, %cst_19 {dimension_numbers = #tpu.dot_dimension_numbers<[1], [0], [0], [1], [0, 0, 1, 1], [], []>} : vector<1x8xf32>, vector<8x128xf32>, vector<1x128xf32> -> vector<1x128xf32>
    %c0_20 = arith.constant 0 : index
    %c0_21 = arith.constant 0 : index
    %41 = vector.load %arg4[%c0_20, %c0_21] : memref<32x2xf32, #tpu.memory_space<vmem>>, vector<32x2xf32>
    %cst_22 = arith.constant 0.000000e+00 : f32
    %42 = vector.broadcast %cst_22 : f32 to vector<2x4xf32>
    %43 = arith.subf %42, %10 : vector<2x4xf32>
    %44 = arith.mulf %43, %31 : vector<2x4xf32>
    %45 = tpu.concatenate %31, %44 in 1 : vector<2x4xf32>, vector<2x4xf32> -> vector<2x8xf32>
    %c0_23 = arith.constant 0 : index
    %c0_24 = arith.constant 0 : index
    %46 = vector.load %arg3[%c0_23, %c0_24] : memref<8x128xf32, #tpu.memory_space<vmem>>, vector<8x128xf32>
    %cst_25 = arith.constant dense<0.000000e+00> : vector<2x128xf32>
    %47 = tpu.matmul %45, %46, %cst_25 {dimension_numbers = #tpu.dot_dimension_numbers<[1], [0], [0], [1], [0, 0, 1, 1], [], []>} : vector<2x8xf32>, vector<8x128xf32>, vector<2x128xf32> -> vector<2x128xf32>
    %cst_26 = arith.constant dense<0.000000e+00> : vector<32x128xf32>
    %48 = tpu.matmul %41, %47, %cst_26 {dimension_numbers = #tpu.dot_dimension_numbers<[1], [0], [0], [1], [0, 0, 1, 1], [], []>} : vector<32x2xf32>, vector<2x128xf32>, vector<32x128xf32> -> vector<32x128xf32>
    %49 = vector.extract_strided_slice %40 {offsets = [0, 0], sizes = [1, 64], strides = [1, 1]} : vector<1x128xf32> to vector<1x64xf32>
    %50 = vector.broadcast %49 : vector<1x64xf32> to vector<32x64xf32>
    %51 = arith.mulf %0, %50 : vector<32x64xf32>
    %52 = vector.extract_strided_slice %40 {offsets = [0, 64], sizes = [1, 64], strides = [1, 1]} : vector<1x128xf32> to vector<1x64xf32>
    %53 = vector.broadcast %52 : vector<1x64xf32> to vector<32x64xf32>
    %54 = arith.addf %51, %53 : vector<32x64xf32>
    %cst_27 = arith.constant 0.000000e+00 : f32
    %55 = vector.broadcast %cst_27 : f32 to vector<32x64xf32>
    %56 = arith.cmpf ogt, %54, %55 : vector<32x64xf32>
    %cst_28 = arith.constant 0.00999999977 : f32
    %57 = vector.broadcast %cst_28 : f32 to vector<32x64xf32>
    %58 = arith.mulf %57, %54 : vector<32x64xf32>
    %59 = arith.select %56, %54, %58 : vector<32x64xi1>, vector<32x64xf32>
    %60 = vector.extract_strided_slice %48 {offsets = [0, 0], sizes = [32, 64], strides = [1, 1]} : vector<32x128xf32> to vector<32x64xf32>
    %61 = arith.mulf %0, %60 : vector<32x64xf32>
    %62 = vector.extract_strided_slice %48 {offsets = [0, 64], sizes = [32, 64], strides = [1, 1]} : vector<32x128xf32> to vector<32x64xf32>
    %63 = arith.addf %61, %62 : vector<32x64xf32>
    %cst_29 = arith.constant 0.000000e+00 : f32
    %64 = vector.broadcast %cst_29 : f32 to vector<32x64xf32>
    %65 = arith.cmpf ogt, %63, %64 : vector<32x64xf32>
    %cst_30 = arith.constant 0.00999999977 : f32
    %66 = vector.broadcast %cst_30 : f32 to vector<32x64xf32>
    %67 = arith.mulf %66, %63 : vector<32x64xf32>
    %68 = arith.select %65, %63, %67 : vector<32x64xi1>, vector<32x64xf32>
    %69 = tpu.concatenate %59, %68 in 1 : vector<32x64xf32>, vector<32x64xf32> -> vector<32x128xf32>
    %c0_31 = arith.constant 0 : index
    %c0_32 = arith.constant 0 : index
    %70 = vector.load %arg5[%c0_31, %c0_32] : memref<64x32xf32, #tpu.memory_space<vmem>>, vector<64x32xf32>
    %cst_33 = arith.constant dense<0.000000e+00> : vector<64x128xf32>
    %71 = tpu.matmul %70, %69, %cst_33 {dimension_numbers = #tpu.dot_dimension_numbers<[1], [0], [0], [1], [0, 0, 1, 1], [], []>} : vector<64x32xf32>, vector<32x128xf32>, vector<64x128xf32> -> vector<64x128xf32>
    %72 = vector.extract_strided_slice %71 {offsets = [0, 0], sizes = [32, 128], strides = [1, 1]} : vector<64x128xf32> to vector<32x128xf32>
    %73 = vector.extract_strided_slice %71 {offsets = [32, 0], sizes = [32, 128], strides = [1, 1]} : vector<64x128xf32> to vector<32x128xf32>
    %74 = tpu.concatenate %69, %72, %73 in 1 : vector<32x128xf32>, vector<32x128xf32>, vector<32x128xf32> -> vector<32x384xf32>
    %c0_34 = arith.constant 0 : index
    %c0_35 = arith.constant 0 : index
    %75 = vector.load %arg6[%c0_34, %c0_35] : memref<384x256xf32, #tpu.memory_space<vmem>>, vector<384x256xf32>
    %cst_36 = arith.constant dense<0.000000e+00> : vector<32x256xf32>
    %76 = tpu.matmul %74, %75, %cst_36 {dimension_numbers = #tpu.dot_dimension_numbers<[1], [0], [0], [1], [0, 0, 1, 1], [], []>} : vector<32x384xf32>, vector<384x256xf32>, vector<32x256xf32> -> vector<32x256xf32>
    %c0_37 = arith.constant 0 : index
    %c0_38 = arith.constant 0 : index
    %77 = vector.load %arg7[%c0_37, %c0_38] : memref<1x256xf32, #tpu.memory_space<vmem>>, vector<1x256xf32>
    %78 = vector.broadcast %77 : vector<1x256xf32> to vector<32x256xf32>
    %79 = arith.addf %76, %78 : vector<32x256xf32>
    %80 = vector.extract_strided_slice %79 {offsets = [0, 0], sizes = [32, 128], strides = [1, 1]} : vector<32x256xf32> to vector<32x128xf32>
    %81 = vector.extract_strided_slice %79 {offsets = [0, 128], sizes = [32, 128], strides = [1, 1]} : vector<32x256xf32> to vector<32x128xf32>
    %82 = arith.addf %80, %81 : vector<32x128xf32>
    %c0_39 = arith.constant 0 : index
    %c0_40 = arith.constant 0 : index
    %83 = vector.load %arg8[%c0_39, %c0_40] : memref<8x32xf32, #tpu.memory_space<vmem>>, vector<8x32xf32>
    %cst_41 = arith.constant dense<0.000000e+00> : vector<8x128xf32>
    %84 = tpu.matmul %83, %82, %cst_41 {dimension_numbers = #tpu.dot_dimension_numbers<[1], [0], [0], [1], [0, 0, 1, 1], [], []>} : vector<8x32xf32>, vector<32x128xf32>, vector<8x128xf32> -> vector<8x128xf32>
    %c0_42 = arith.constant 0 : index
    %c0_43 = arith.constant 0 : index
    %85 = vector.load %arg9[%c0_42, %c0_43] : memref<128x128xf32, #tpu.memory_space<vmem>>, vector<128x128xf32>
    %cst_44 = arith.constant dense<0.000000e+00> : vector<8x128xf32>
    %86 = tpu.matmul %84, %85, %cst_44 {dimension_numbers = #tpu.dot_dimension_numbers<[1], [0], [0], [1], [0, 0, 1, 1], [], []>} : vector<8x128xf32>, vector<128x128xf32>, vector<8x128xf32> -> vector<8x128xf32>
    %c0_45 = arith.constant 0 : index
    %c0_46 = arith.constant 0 : index
    %87 = vector.load %arg10[%c0_45, %c0_46] : memref<8x128xf32, #tpu.memory_space<vmem>>, vector<8x128xf32>
    %88 = arith.mulf %86, %87 : vector<8x128xf32>
    %c0_47 = arith.constant 0 : index
    %c0_48 = arith.constant 0 : index
    %89 = vector.load %arg11[%c0_47, %c0_48] : memref<2x8xf32, #tpu.memory_space<vmem>>, vector<2x8xf32>
    %cst_49 = arith.constant dense<0.000000e+00> : vector<2x128xf32>
    %90 = tpu.matmul %89, %88, %cst_49 {dimension_numbers = #tpu.dot_dimension_numbers<[1], [0], [0], [1], [0, 0, 1, 1], [], []>} : vector<2x8xf32>, vector<8x128xf32>, vector<2x128xf32> -> vector<2x128xf32>
    %c0_50 = arith.constant 0 : index
    %c0_51 = arith.constant 0 : index
    %91 = vector.load %arg12[%c0_50, %c0_51] : memref<128x8xf32, #tpu.memory_space<vmem>>, vector<128x8xf32>
    %cst_52 = arith.constant dense<0.000000e+00> : vector<2x8xf32>
    %92 = tpu.matmul %90, %91, %cst_52 {dimension_numbers = #tpu.dot_dimension_numbers<[1], [0], [0], [1], [0, 0, 1, 1], [], []>} : vector<2x128xf32>, vector<128x8xf32>, vector<2x8xf32> -> vector<2x8xf32>
    %cst_53 = arith.constant 0.000000e+00 : f32
    %93 = vector.broadcast %cst_53 : f32 to vector<2x8xf32>
    %94 = arith.maximumf %92, %93 : vector<2x8xf32>
    %c0_54 = arith.constant 0 : index
    %c0_55 = arith.constant 0 : index
    %95 = vector.load %arg13[%c0_54, %c0_55] : memref<8x256xf32, #tpu.memory_space<vmem>>, vector<8x256xf32>
    %cst_56 = arith.constant dense<0.000000e+00> : vector<2x256xf32>
    %96 = tpu.matmul %94, %95, %cst_56 {dimension_numbers = #tpu.dot_dimension_numbers<[1], [0], [0], [1], [0, 0, 1, 1], [], []>} : vector<2x8xf32>, vector<8x256xf32>, vector<2x256xf32> -> vector<2x256xf32>
    %c0_57 = arith.constant 0 : index
    %c0_58 = arith.constant 0 : index
    %97 = vector.load %arg14[%c0_57, %c0_58] : memref<1x256xf32, #tpu.memory_space<vmem>>, vector<1x256xf32>
    %98 = vector.broadcast %97 : vector<1x256xf32> to vector<2x256xf32>
    %99 = arith.addf %96, %98 : vector<2x256xf32>
    %100 = vector.extract_strided_slice %99 {offsets = [0, 0], sizes = [2, 128], strides = [1, 1]} : vector<2x256xf32> to vector<2x128xf32>
    %101 = vector.extract_strided_slice %99 {offsets = [0, 128], sizes = [2, 128], strides = [1, 1]} : vector<2x256xf32> to vector<2x128xf32>
    %102 = arith.maximumf %100, %101 : vector<2x128xf32>
    %103 = arith.subf %100, %102 : vector<2x128xf32>
    %104 = math.exp %103 : vector<2x128xf32>
    %105 = arith.subf %101, %102 : vector<2x128xf32>
    %106 = math.exp %105 : vector<2x128xf32>
    %107 = arith.addf %104, %106 : vector<2x128xf32>
    %108 = tpu.reciprocal %107 {approx = true} : vector<2x128xf32> -> vector<2x128xf32>
    %109 = arith.mulf %104, %108 : vector<2x128xf32>
    %110 = arith.mulf %106, %108 : vector<2x128xf32>
    %111 = tpu.concatenate %109, %110 in 1 : vector<2x128xf32>, vector<2x128xf32> -> vector<2x256xf32>
    %c0_59 = arith.constant 0 : index
    %c0_60 = arith.constant 0 : index
    %112 = vector.load %arg4[%c0_59, %c0_60] : memref<32x2xf32, #tpu.memory_space<vmem>>, vector<32x2xf32>
    %cst_61 = arith.constant dense<0.000000e+00> : vector<32x256xf32>
    %113 = tpu.matmul %112, %111, %cst_61 {dimension_numbers = #tpu.dot_dimension_numbers<[1], [0], [0], [1], [0, 0, 1, 1], [], []>} : vector<32x2xf32>, vector<2x256xf32>, vector<32x256xf32> -> vector<32x256xf32>
    %c0_62 = arith.constant 0 : index
    %c0_63 = arith.constant 0 : index
    %114 = vector.load %arg15[%c0_62, %c0_63] : memref<32x256xf32, #tpu.memory_space<vmem>>, vector<32x256xf32>
    %115 = arith.mulf %113, %114 : vector<32x256xf32>
    %c0_64 = arith.constant 0 : index
    %c0_65 = arith.constant 0 : index
    %116 = vector.load %arg16[%c0_64, %c0_65] : memref<256x256xf32, #tpu.memory_space<vmem>>, vector<256x256xf32>
    %cst_66 = arith.constant dense<0.000000e+00> : vector<32x256xf32>
    %117 = tpu.matmul %115, %116, %cst_66 {dimension_numbers = #tpu.dot_dimension_numbers<[1], [0], [0], [1], [0, 0, 1, 1], [], []>} : vector<32x256xf32>, vector<256x256xf32>, vector<32x256xf32> -> vector<32x256xf32>
    %118 = arith.mulf %79, %117 : vector<32x256xf32>
    %119 = vector.extract_strided_slice %118 {offsets = [0, 0], sizes = [32, 128], strides = [1, 1]} : vector<32x256xf32> to vector<32x128xf32>
    %120 = vector.extract_strided_slice %118 {offsets = [0, 128], sizes = [32, 128], strides = [1, 1]} : vector<32x256xf32> to vector<32x128xf32>
    %121 = arith.addf %119, %120 : vector<32x128xf32>
    %c0_67 = arith.constant 0 : index
    %c0_68 = arith.constant 0 : index
    %122 = vector.load %arg17[%c0_67, %c0_68] : memref<32x128xf32, #tpu.memory_space<vmem>>, vector<32x128xf32>
    tpu.vector_store %arg17[%c0_67, %c0_68], %121 {strides = array<i32>} : memref<32x128xf32, #tpu.memory_space<vmem>>, vector<32x128xf32>,
    return
  }
}

</mosaic_0001>

<llo_original>
// kernel: tile.13
$region0: #{tile.13}
  #allocation0 [shape = 's32[1]{0}', space=sflag, size = 0x4, scoped, tag = 'scoped memory for tile.13']
  %s0 = inlined_call_operand.vmem [shape: f32[8], index: 0, kind: input, shape index: {}]
  %s1 = inlined_call_operand.vmem [shape: f32[16,8], index: 1, kind: output, shape index: {}]
  // Predicated region
  $region2: #{tile.13} parent=0 // pred_check
    _
  $region3: #{tile.13} parent=0 // pred_check_branch
    %3 = sbr.rel (0) target = $region5
  $region4: #{tile.13} parent=0 // pred_region
    _
  $region5: #{tile.13} parent=0 // pred_fallthru
    _
  %v4 = vld [vmem:[%s0] ss:$0 sm:$0xff]
  %5 = vst [vmem:[%s1] sm:$0xff] %v4
  %s6 = scalar_lea.vmem %s1, 8
  %7 = vst [vmem:[%s6] sm:$0xff] %v4

// kernel: tile.14
$region0: #{tile.14}
  %s0 = inlined_call_operand.vmem [shape: f32[16,8], index: 0, kind: input, shape index: {}]
  %s1 = inlined_call_operand.vmem [shape: f32[128], index: 1, kind: output, shape index: {}]
  $region1: #{tile.14} parent=0
    #allocation0 [shape = 'u8[4096]{0}', space=vmem, size = 0x1000, scoped, tag = 'scoped mem for output reshape']
    %v2 = vld [vmem:[%s0] sm:$0x1]
    %vm3 = vcmask 64512
    %4 = vst.msk [vmem:[#allocation0] sm:$0x1] %vm3, %v2
    %s5 = scalar_lea.vmem %s0, 15
    %v6 = vld [vmem:[%s5] sm:$0x1]
    %7 = vrot.lane.b32.xlu0 %v6, 120
    %v8 = vpop.permute.xlu0 %7
    %vm9 = vcmask 1048512
    %10 = vst.msk [vmem:[#allocation0] sm:$0x1] %vm9, %v8
    %s11 = scalar_lea.vmem %s0, 14
    %v12 = vld [vmem:[%s11] sm:$0x1]
    %13 = vrot.lane.b32.xlu0 %v12, 112
    %v14 = vpop.permute.xlu0 %13
    %vm15 = vcmask 982912
    %16 = vst.msk [vmem:[#allocation0] sm:$0x1] %vm15, %v14
    %s17 = scalar_lea.vmem %s0, 13
    %v18 = vld [vmem:[%s17] sm:$0x1]
    %19 = vrot.lane.b32.xlu0 %v18, 104
    %v20 = vpop.permute.xlu0 %19
    %vm21 = vcmask 917312
    %22 = vst.msk [vmem:[#allocation0] sm:$0x1] %vm21, %v20
    %s23 = scalar_lea.vmem %s0, 12
    %v24 = vld [vmem:[%s23] sm:$0x1]
    %25 = vrot.lane.b32.xlu0 %v24, 96
    %v26 = vpop.permute.xlu0 %25
    %vm27 = vcmask 851712
    %28 = vst.msk [vmem:[#allocation0] sm:$0x1] %vm27, %v26
    %s29 = scalar_lea.vmem %s0, 11
    %v30 = vld [vmem:[%s29] sm:$0x1]
    %31 = vrot.lane.b32.xlu0 %v30, 88
    %v32 = vpop.permute.xlu0 %31
    %vm33 = vcmask 786112
    %34 = vst.msk [vmem:[#allocation0] sm:$0x1] %vm33, %v32
    %s35 = scalar_lea.vmem %s0, 10
    %v36 = vld [vmem:[%s35] sm:$0x1]
    %37 = vrot.lane.b32.xlu0 %v36, 80
    %v38 = vpop.permute.xlu0 %37
    %vm39 = vcmask 720512
    %40 = vst.msk [vmem:[#allocation0] sm:$0x1] %vm39, %v38
    %s41 = scalar_lea.vmem %s0, 9
    %v42 = vld [vmem:[%s41] sm:$0x1]
    %43 = vrot.lane.b32.xlu0 %v42, 72
    %v44 = vpop.permute.xlu0 %43
    %vm45 = vcmask 654912
    %46 = vst.msk [vmem:[#allocation0] sm:$0x1] %vm45, %v44
    %s47 = scalar_lea.vmem %s0, 8
    %v48 = vld [vmem:[%s47] sm:$0x1]
    %49 = vrot.lane.b32.xlu0 %v48, 64
    %v50 = vpop.permute.xlu0 %49
    %vm51 = vcmask 589312
    %52 = vst.msk [vmem:[#allocation0] sm:$0x1] %vm51, %v50
    %s53 = scalar_lea.vmem %s0, 7
    %v54 = vld [vmem:[%s53] sm:$0x1]
    %55 = vrot.lane.b32.xlu0 %v54, 56
    %v56 = vpop.permute.xlu0 %55
    %vm57 = vcmask 523712
    %58 = vst.msk [vmem:[#allocation0] sm:$0x1] %vm57, %v56
    %s59 = scalar_lea.vmem %s0, 6
    %v60 = vld [vmem:[%s59] sm:$0x1]
    %61 = vrot.lane.b32.xlu0 %v60, 48
    %v62 = vpop.permute.xlu0 %61
    %vm63 = vcmask 458112
    %64 = vst.msk [vmem:[#allocation0] sm:$0x1] %vm63, %v62
    %s65 = scalar_lea.vmem %s0, 5
    %v66 = vld [vmem:[%s65] sm:$0x1]
    %67 = vrot.lane.b32.xlu0 %v66, 40
    %v68 = vpop.permute.xlu0 %67
    %vm69 = vcmask 392512
    %70 = vst.msk [vmem:[#allocation0] sm:$0x1] %vm69, %v68
    %s71 = scalar_lea.vmem %s0, 4
    %v72 = vld [vmem:[%s71] sm:$0x1]
    %73 = vrot.lane.b32.xlu0 %v72, 32
    %v74 = vpop.permute.xlu0 %73
    %vm75 = vcmask 326912
    %76 = vst.msk [vmem:[#allocation0] sm:$0x1] %vm75, %v74
    %s77 = scalar_lea.vmem %s0, 3
    %v78 = vld [vmem:[%s77] sm:$0x1]
    %79 = vrot.lane.b32.xlu0 %v78, 24
    %v80 = vpop.permute.xlu0 %79
    %vm81 = vcmask 261312
    %82 = vst.msk [vmem:[#allocation0] sm:$0x1] %vm81, %v80
    %s83 = scalar_lea.vmem %s0, 2
    %v84 = vld [vmem:[%s83] sm:$0x1]
    %85 = vrot.lane.b32.xlu0 %v84, 16
    %v86 = vpop.permute.xlu0 %85
    %vm87 = vcmask 195712
    %88 = vst.msk [vmem:[#allocation0] sm:$0x1] %vm87, %v86
    %s89 = scalar_lea.vmem %s0, 1
    %v90 = vld [vmem:[%s89] sm:$0x1]
    %91 = vrot.lane.b32.xlu0 %v90, 8
    %v92 = vpop.permute.xlu0 %91
    %vm93 = vcmask 130112
    %94 = vst.msk [vmem:[#allocation0] sm:$0x1] %vm93, %v92
    %s96 = ssub.s32 2, 1
    %v97 = vld [vmem:[#allocation0] sm:%s96]
    %s99 = ssub.s32 2, 1
    %100 = vst [vmem:[%s1] sm:%s99] %v97

// kernel: selective_conv_forward.1
$region0: #{selective_conv_forward.1}
  #allocation0 [shape = 'u32[]', space=smem, size = 0x4, offset = 0x4, fixed_abs, tag = 'smem constant byte address 0x4 - core index']
  #allocation1 [shape = 'u32[72,128]{1,0:T(1,128)}', space=vmem, size = 0x9000, scoped, tag = 'internal scratch']
  %s0 = inlined_call_operand.vmem [shape: f32[32,64], index: 0, kind: input, shape index: {}]
  %s1 = inlined_call_operand.vmem [shape: f32[2,32], index: 1, kind: input, shape index: {}]
  %s2 = inlined_call_operand.vmem [shape: f32[128,8], index: 2, kind: input, shape index: {}]
  %s3 = inlined_call_operand.vmem [shape: f32[8,128], index: 3, kind: input, shape index: {}]
  %s4 = inlined_call_operand.vmem [shape: f32[32,2], index: 4, kind: input, shape index: {}]
  %s5 = inlined_call_operand.vmem [shape: f32[64,32], index: 5, kind: input, shape index: {}]
  %s6 = inlined_call_operand.vmem [shape: f32[384,256], index: 6, kind: input, shape index: {}]
  %s7 = inlined_call_operand.vmem [shape: f32[1,256], index: 7, kind: input, shape index: {}]
  %s8 = inlined_call_operand.vmem [shape: f32[8,32], index: 8, kind: input, shape index: {}]
  %s9 = inlined_call_operand.vmem [shape: f32[128,128], index: 9, kind: input, shape index: {}]
  %s10 = inlined_call_operand.vmem [shape: f32[8,128], index: 10, kind: input, shape index: {}]
  %s11 = inlined_call_operand.vmem [shape: f32[2,8], index: 11, kind: input, shape index: {}]
  %s12 = inlined_call_operand.vmem [shape: f32[128,8], index: 12, kind: input, shape index: {}]
  %s13 = inlined_call_operand.vmem [shape: f32[8,256], index: 13, kind: input, shape index: {}]
  %s14 = inlined_call_operand.vmem [shape: f32[1,256], index: 14, kind: input, shape index: {}]
  %s15 = inlined_call_operand.vmem [shape: f32[32,256], index: 15, kind: input, shape index: {}]
  %s16 = inlined_call_operand.vmem [shape: f32[256,256], index: 16, kind: input, shape index: {}]
  %s17 = inlined_call_operand.vmem [shape: f32[32,128], index: 17, kind: output, shape index: {}]
  %s18 = sld [smem:[#allocation0]]
  $region78: #{selective_conv_forward.1} parent=0
    _
  %s20 = ssub.s32 1, %s18
  %s21 = scalar_select 0, %s20, %s18
  // Predicated region
  $region2: #{selective_conv_forward.1} parent=0 // pred_check
    _
  $region3: #{selective_conv_forward.1} parent=0 // pred_check_branch
    %23 = sbr.rel (0) target = $region5
  $region4: #{selective_conv_forward.1} parent=0 // pred_region
    _
  $region5: #{selective_conv_forward.1} parent=0 // pred_fallthru
    _
  // Predicated region
  $region6: #{selective_conv_forward.1} parent=0 // pred_check
    _
  $region7: #{selective_conv_forward.1} parent=0 // pred_check_branch
    %25 = sbr.rel (0) target = $region9
  $region8: #{selective_conv_forward.1} parent=0 // pred_region
    _
  $region9: #{selective_conv_forward.1} parent=0 // pred_fallthru
    _
  // Predicated region
  $region10: #{selective_conv_forward.1} parent=0 // pred_check
    _
  $region11: #{selective_conv_forward.1} parent=0 // pred_check_branch
    %27 = sbr.rel (0) target = $region13
  $region12: #{selective_conv_forward.1} parent=0 // pred_region
    _
  $region13: #{selective_conv_forward.1} parent=0 // pred_fallthru
    _
  // Predicated region
  $region14: #{selective_conv_forward.1} parent=0 // pred_check
    _
  $region15: #{selective_conv_forward.1} parent=0 // pred_check_branch
    %29 = sbr.rel (0) target = $region17
  $region16: #{selective_conv_forward.1} parent=0 // pred_region
    _
  $region17: #{selective_conv_forward.1} parent=0 // pred_fallthru
    _
  // Predicated region
  $region18: #{selective_conv_forward.1} parent=0 // pred_check
    _
  $region19: #{selective_conv_forward.1} parent=0 // pred_check_branch
    %31 = sbr.rel (0) target = $region21
  $region20: #{selective_conv_forward.1} parent=0 // pred_region
    _
  $region21: #{selective_conv_forward.1} parent=0 // pred_fallthru
    _
  // Predicated region
  $region22: #{selective_conv_forward.1} parent=0 // pred_check
    _
  $region23: #{selective_conv_forward.1} parent=0 // pred_check_branch
    %33 = sbr.rel (0) target = $region25
  $region24: #{selective_conv_forward.1} parent=0 // pred_region
    _
  $region25: #{selective_conv_forward.1} parent=0 // pred_fallthru
    _
  // Predicated region
  $region26: #{selective_conv_forward.1} parent=0 // pred_check
    _
  $region27: #{selective_conv_forward.1} parent=0 // pred_check_branch
    %35 = sbr.rel (0) target = $region29
  $region28: #{selective_conv_forward.1} parent=0 // pred_region
    _
  $region29: #{selective_conv_forward.1} parent=0 // pred_fallthru
    _
  // Predicated region
  $region30: #{selective_conv_forward.1} parent=0 // pred_check
    _
  $region31: #{selective_conv_forward.1} parent=0 // pred_check_branch
    %37 = sbr.rel (0) target = $region33
  $region32: #{selective_conv_forward.1} parent=0 // pred_region
    _
  $region33: #{selective_conv_forward.1} parent=0 // pred_fallthru
    _
  // Predicated region
  $region34: #{selective_conv_forward.1} parent=0 // pred_check
    _
  $region35: #{selective_conv_forward.1} parent=0 // pred_check_branch
    %39 = sbr.rel (0) target = $region37
  $region36: #{selective_conv_forward.1} parent=0 // pred_region
    _
  $region37: #{selective_conv_forward.1} parent=0 // pred_fallthru
    _
  // Predicated region
  $region38: #{selective_conv_forward.1} parent=0 // pred_check
    _
  $region39: #{selective_conv_forward.1} parent=0 // pred_check_branch
    %41 = sbr.rel (0) target = $region41
  $region40: #{selective_conv_forward.1} parent=0 // pred_region
    _
  $region41: #{selective_conv_forward.1} parent=0 // pred_fallthru
    _
  // Predicated region
  $region42: #{selective_conv_forward.1} parent=0 // pred_check
    _
  $region43: #{selective_conv_forward.1} parent=0 // pred_check_branch
    %43 = sbr.rel (0) target = $region45
  $region44: #{selective_conv_forward.1} parent=0 // pred_region
    _
  $region45: #{selective_conv_forward.1} parent=0 // pred_fallthru
    _
  // Predicated region
  $region46: #{selective_conv_forward.1} parent=0 // pred_check
    _
  $region47: #{selective_conv_forward.1} parent=0 // pred_check_branch
    %45 = sbr.rel (0) target = $region49
  $region48: #{selective_conv_forward.1} parent=0 // pred_region
    _
  $region49: #{selective_conv_forward.1} parent=0 // pred_fallthru
    _
  // Predicated region
  $region50: #{selective_conv_forward.1} parent=0 // pred_check
    _
  $region51: #{selective_conv_forward.1} parent=0 // pred_check_branch
    %47 = sbr.rel (0) target = $region53
  $region52: #{selective_conv_forward.1} parent=0 // pred_region
    _
  $region53: #{selective_conv_forward.1} parent=0 // pred_fallthru
    _
  // Predicated region
  $region54: #{selective_conv_forward.1} parent=0 // pred_check
    _
  $region55: #{selective_conv_forward.1} parent=0 // pred_check_branch
    %49 = sbr.rel (0) target = $region57
  $region56: #{selective_conv_forward.1} parent=0 // pred_region
    _
  $region57: #{selective_conv_forward.1} parent=0 // pred_fallthru
    _
  // Predicated region
  $region58: #{selective_conv_forward.1} parent=0 // pred_check
    _
  $region59: #{selective_conv_forward.1} parent=0 // pred_check_branch
    %51 = sbr.rel (0) target = $region61
  $region60: #{selective_conv_forward.1} parent=0 // pred_region
    _
  $region61: #{selective_conv_forward.1} parent=0 // pred_fallthru
    _
  // Predicated region
  $region62: #{selective_conv_forward.1} parent=0 // pred_check
    _
  $region63: #{selective_conv_forward.1} parent=0 // pred_check_branch
    %53 = sbr.rel (0) target = $region65
  $region64: #{selective_conv_forward.1} parent=0 // pred_region
    _
  $region65: #{selective_conv_forward.1} parent=0 // pred_fallthru
    _
  // Predicated region
  $region66: #{selective_conv_forward.1} parent=0 // pred_check
    _
  $region67: #{selective_conv_forward.1} parent=0 // pred_check_branch
    %55 = sbr.rel (0) target = $region69
  $region68: #{selective_conv_forward.1} parent=0 // pred_region
    _
  $region69: #{selective_conv_forward.1} parent=0 // pred_fallthru
    _
  %v56 = vld [vmem:[%s0] sm:$0xff]
  %v57 = vld [vmem:[%s0 + $0x8] sm:$0xff]
  %v58 = vld [vmem:[%s0 + $0x10] sm:$0xff]
  %v59 = vld [vmem:[%s0 + $0x18] sm:$0xff]
  %v60 = vmul.f32 %v56, %v56
  %v61 = vmul.f32 %v57, %v57
  %v62 = vmul.f32 %v58, %v58
  %v63 = vmul.f32 %v59, %v59
  %68 = vrot.lane.b32.xlu0 %v60, 64
  %v69 = vpop.permute.xlu0 %68
  %70 = vrot.lane.b32.xlu0 %v61, 64
  %v71 = vpop.permute.xlu0 %70
  %72 = vrot.lane.b32.xlu0 %v62, 64
  %v73 = vpop.permute.xlu0 %72
  %74 = vrot.lane.b32.xlu0 %v63, 64
  %v75 = vpop.permute.xlu0 %74
  %vm80 = vcmask 523264
  %v81 = vsel %vm80, %v56, %v69
  %v82 = vsel %vm80, %v57, %v71
  %v83 = vsel %vm80, %v58, %v73
  %v84 = vsel %vm80, %v59, %v75
  %v85 = vld [vmem:[%s1] sm:$0x3]
  %vm86 = vcmask 261120
  %v88 = vsel %vm86, %v85, 0
  %90 = vmatpush.msra.mxu0 0.0
  %91 = vmatpush.msra.mxu0 0.0
  %92 = vmatpush.msra.mxu0 0.0
  %93 = vmatpush.msra.mxu0 0.0
  %94 = vmatpush.msra.mxu0 0.0
  %95 = vmatpush.msra.mxu0 0.0
  %96 = vmatpush.msra.mxu0 0.0
  %97 = vmatpush.msra.mxu0 0.0
  %98 = vmatpush.msra.mxu0 0.0
  %99 = vmatpush.msra.mxu0 0.0
  %100 = vmatpush.msra.mxu0 0.0
  %101 = vmatpush.msra.mxu0 0.0
  %102 = vmatpush.msra.mxu0 %v84
  %103 = vmatpush.msra.mxu0 %v83
  %104 = vmatpush.msra.mxu0 %v82
  %105 = vmatpush.msra.mxu0 %v81
  %106 = vmatmul.f32.gmra.mxu0 %v88
  %v107 = vpop.f32.mrf.mxu0
  %v108 = vadd.f32 0.0, %v107
  %109 = vdwg.mxu0
  %v110 = vld [vmem:[%s2] sm:$0xff]
  %v111 = vld [vmem:[%s2 + $0x8] sm:$0xff]
  %v112 = vld [vmem:[%s2 + $0x10] sm:$0xff]
  %v113 = vld [vmem:[%s2 + $0x18] sm:$0xff]
  %v114 = vld [vmem:[%s2 + $0x20] sm:$0xff]
  %v115 = vld [vmem:[%s2 + $0x28] sm:$0xff]
  %v116 = vld [vmem:[%s2 + $0x30] sm:$0xff]
  %v117 = vld [vmem:[%s2 + $0x38] sm:$0xff]
  %v118 = vld [vmem:[%s2 + $0x40] sm:$0xff]
  %v119 = vld [vmem:[%s2 + $0x48] sm:$0xff]
  %v120 = vld [vmem:[%s2 + $0x50] sm:$0xff]
  %v121 = vld [vmem:[%s2 + $0x58] sm:$0xff]
  %v122 = vld [vmem:[%s2 + $0x60] sm:$0xff]
  %v123 = vld [vmem:[%s2 + $0x68] sm:$0xff]
  %v124 = vld [vmem:[%s2 + $0x70] sm:$0xff]
  %v125 = vld [vmem:[%s2 + $0x78] sm:$0xff]
  %126 = vmatpush.msra.mxu0 %v125
  %127 = vmatpush.msra.mxu0 %v124
  %128 = vmatpush.msra.mxu0 %v123
  %129 = vmatpush.msra.mxu0 %v122
  %130 = vmatpush.msra.mxu0 %v121
  %131 = vmatpush.msra.mxu0 %v120
  %132 = vmatpush.msra.mxu0 %v119
  %133 = vmatpush.msra.mxu0 %v118
  %134 = vmatpush.msra.mxu0 %v117
  %135 = vmatpush.msra.mxu0 %v116
  %136 = vmatpush.msra.mxu0 %v115
  %137 = vmatpush.msra.mxu0 %v114
  %138 = vmatpush.msra.mxu0 %v113
  %139 = vmatpush.msra.mxu0 %v112
  %140 = vmatpush.msra.mxu0 %v111
  %141 = vmatpush.msra.mxu0 %v110
  %142 = vmatmul.f32.gmra.mxu0 %v108
  %v143 = vpop.f32.mrf.mxu0
  %v144 = vadd.f32 0.0, %v143
  %145 = vdwg.mxu0
  %v146 = vrcp.pop 256.0
  %v147 = vmul.f32 256.0, %v146
  %v148 = vsub.f32 1.0, %v147
  %v149 = vmul.f32 %v146, %v148
  %v150 = vadd.f32 %v146, %v149
  %vm151 = vweird.f32 %v146
  %v152 = vsel %vm151, %v146, %v150
  %v153 = vmul.f32 %v144, %v152
  %v154 = vmul.f32 %v153, %v153
  %156 = vrot.lane.b32.xlu0 %v154, 4
  %v157 = vpop.permute.xlu0 %156
  %v159 = vsub.f32 %v153, %v157
  %v160 = vmax.f32 %v159, 0.0
  %vm161 = vcmask 25600
  %v162 = vsel %vm161, %v144, 0.0
  %v163 = vrot.slane %v162, 4
  %v164 = vadd.f32 %v162, %v163
  %v165 = vrot.slane %v164, 2
  %v166 = vadd.f32 %v164, %v165
  %v167 = vrot.slane %v166, 1
  %v168 = vadd.f32 %v166, %v167
  %vm169 = vcmask 58400
  %v170 = vsel %vm169, %v144, 0.0
  %v171 = vrot.slane %v170, 4
  %v172 = vadd.f32 %v170, %v171
  %v173 = vrot.slane %v172, 2
  %v174 = vadd.f32 %v172, %v173
  %v175 = vrot.slane %v174, 1
  %v176 = vadd.f32 %v174, %v175
  %v177 = vrcp.pop 512.0
  %v178 = vmul.f32 512.0, %v177
  %v179 = vsub.f32 1.0, %v178
  %v180 = vmul.f32 %v177, %v179
  %v181 = vadd.f32 %v177, %v180
  %vm182 = vweird.f32 %v177
  %v183 = vsel %vm182, %v177, %v181
  %v184 = vmul.f32 %v168, %v183
  %v185 = vmul.f32 %v176, %v183
  %v186 = vmul.f32 %v184, %v184
  %188 = vrot.lane.b32.xlu0 %v186, 4
  %v189 = vpop.permute.xlu0 %188
  %v191 = vsub.f32 %v185, %v189
  %v192 = vmax.f32 %v191, 0.0
  %v193 = vadd.f32 %v160, 1e-05
  %v194 = vrsqrt.pop %v193
  %v195 = vmul.f32 %v194, %v193
  %v196 = vmul.f32 %v195, %v194
  %v197 = vmul.f32 0.5, %v196
  %v198 = vsub.f32 1.5, %v197
  %v199 = vmul.f32 %v194, %v198
  %vm200 = vweird.f32 %v193
  %vm201 = vweird.f32 %v194
  %vm202 = vmor %vm200, %vm201
  %v203 = vsel %vm202, %v194, %v199
  %v204 = vadd.f32 %v192, 1e-05
  %v205 = vrsqrt.pop %v204
  %v206 = vmul.f32 %v205, %v204
  %v207 = vmul.f32 %v206, %v205
  %v208 = vmul.f32 0.5, %v207
  %v209 = vsub.f32 1.5, %v208
  %v210 = vmul.f32 %v205, %v209
  %vm211 = vweird.f32 %v204
  %vm212 = vweird.f32 %v205
  %vm213 = vmor %vm211, %vm212
  %v214 = vsel %vm213, %v205, %v210
  %v215 = vsub.f32 0.0, %v184
  %217 = vrot.lane.b32.xlu0 %v214, 124
  %v218 = vpop.permute.xlu0 %217
  %v220 = vmul.f32 %v215, %v218
  %222 = vrot.lane.b32.xlu0 %v220, 4
  %v223 = vpop.permute.xlu0 %222
  %vm225 = vcmask 31744
  %v226 = vsel %vm225, %v218, %v223
  %v227 = vld [vmem:[%s3] sm:$0xff]
  %vm228 = vcmask 64512
  %v230 = vsel %vm228, %v226, 0
  %232 = vmatpush.msra.mxu0 0.0
  %233 = vmatpush.msra.mxu0 0.0
  %234 = vmatpush.msra.mxu0 0.0
  %235 = vmatpush.msra.mxu0 0.0
  %236 = vmatpush.msra.mxu0 0.0
  %237 = vmatpush.msra.mxu0 0.0
  %238 = vmatpush.msra.mxu0 0.0
  %239 = vmatpush.msra.mxu0 0.0
  %240 = vmatpush.msra.mxu0 0.0
  %241 = vmatpush.msra.mxu0 0.0
  %242 = vmatpush.msra.mxu0 0.0
  %243 = vmatpush.msra.mxu0 0.0
  %244 = vmatpush.msra.mxu0 0.0
  %245 = vmatpush.msra.mxu0 0.0
  %246 = vmatpush.msra.mxu0 0.0
  %247 = vmatpush.msra.mxu0 %v227
  %248 = vmatmul.f32.gmra.mxu0 %v230
  %v249 = vpop.f32.mrf.mxu0
  %v250 = vadd.f32 0.0, %v249
  %251 = vdwg.mxu0
  %v252 = vld [vmem:[%s4] sm:$0xff]
  %v253 = vld [vmem:[%s4 + $0x8] sm:$0xff]
  %v254 = vld [vmem:[%s4 + $0x10] sm:$0xff]
  %v255 = vld [vmem:[%s4 + $0x18] sm:$0xff]
  %v256 = vsub.f32 0.0, %v153
  %258 = vrot.lane.b32.xlu0 %v203, 124
  %v259 = vpop.permute.xlu0 %258
  %v261 = vmul.f32 %v256, %v259
  %263 = vrot.lane.b32.xlu0 %v261, 4
  %v264 = vpop.permute.xlu0 %263
  %v266 = vsel %vm225, %v259, %v264
  %v268 = vsel %vm228, %v266, 0
  %270 = vmatpush.msra.mxu0 0.0
  %271 = vmatpush.msra.mxu0 0.0
  %272 = vmatpush.msra.mxu0 0.0
  %273 = vmatpush.msra.mxu0 0.0
  %274 = vmatpush.msra.mxu0 0.0
  %275 = vmatpush.msra.mxu0 0.0
  %276 = vmatpush.msra.mxu0 0.0
  %277 = vmatpush.msra.mxu0 0.0
  %278 = vmatpush.msra.mxu0 0.0
  %279 = vmatpush.msra.mxu0 0.0
  %280 = vmatpush.msra.mxu0 0.0
  %281 = vmatpush.msra.mxu0 0.0
  %282 = vmatpush.msra.mxu0 0.0
  %283 = vmatpush.msra.mxu0 0.0
  %284 = vmatpush.msra.mxu0 0.0
  %285 = vmatpush.msra.mxu0 %v227
  %286 = vmatmul.f32.gmra.mxu0 %v268
  %v287 = vpop.f32.mrf.mxu0
  %v288 = vadd.f32 0.0, %v287
  %289 = vdwg.mxu0
  %vm290 = vcmask 15360
  %v292 = vsel %vm290, %v252, 0
  %v295 = vsel %vm290, %v253, 0
  %v298 = vsel %vm290, %v254, 0
  %v301 = vsel %vm290, %v255, 0
  %vm303 = vcmask 1041408
  %v305 = vsel %vm303, %v288, 0
  %307 = vmatpush.msra.mxu0 0.0
  %308 = vmatpush.msra.mxu0 0.0
  %309 = vmatpush.msra.mxu0 0.0
  %310 = vmatpush.msra.mxu0 0.0
  %311 = vmatpush.msra.mxu0 0.0
  %312 = vmatpush.msra.mxu0 0.0
  %313 = vmatpush.msra.mxu0 0.0
  %314 = vmatpush.msra.mxu0 0.0
  %315 = vmatpush.msra.mxu0 0.0
  %316 = vmatpush.msra.mxu0 0.0
  %317 = vmatpush.msra.mxu0 0.0
  %318 = vmatpush.msra.mxu0 0.0
  %319 = vmatpush.msra.mxu0 0.0
  %320 = vmatpush.msra.mxu0 0.0
  %321 = vmatpush.msra.mxu0 0.0
  %322 = vmatpush.msra.mxu0 %v305
  %323 = vmatmul.f32.gmra.mxu0 %v292
  %v324 = vpop.f32.mrf.mxu0
  %v325 = vadd.f32 0.0, %v324
  %326 = vmatmul.f32.gmra.mxu0 %v295
  %v327 = vpop.f32.mrf.mxu0
  %v328 = vadd.f32 0.0, %v327
  %329 = vmatmul.f32.gmra.mxu0 %v298
  %v330 = vpop.f32.mrf.mxu0
  %v331 = vadd.f32 0.0, %v330
  %332 = vmatmul.f32.gmra.mxu0 %v301
  %v333 = vpop.f32.mrf.mxu0
  %v334 = vadd.f32 0.0, %v333
  %335 = vdwg.mxu0
  %v336 = vperm.slane %v250, 0
  %v337 = vmul.f32 %v56, %v336
  %v338 = vmul.f32 %v57, %v336
  %v339 = vmul.f32 %v58, %v336
  %v340 = vmul.f32 %v59, %v336
  %342 = vrot.lane.b32.xlu0 %v336, 64
  %v343 = vpop.permute.xlu0 %342
  %v345 = vadd.f32 %v337, %v343
  %v346 = vadd.f32 %v338, %v343
  %v347 = vadd.f32 %v339, %v343
  %v348 = vadd.f32 %v340, %v343
  %vm349 = vcmp.gt.f32.partialorder %v345, 0.0
  %vm350 = vcmp.gt.f32.partialorder %v346, 0.0
  %vm351 = vcmp.gt.f32.partialorder %v347, 0.0
  %vm352 = vcmp.gt.f32.partialorder %v348, 0.0
  %v353 = vmul.f32 %v345, 0.01
  %v354 = vmul.f32 %v346, 0.01
  %v355 = vmul.f32 %v347, 0.01
  %v356 = vmul.f32 %v348, 0.01
  %v357 = vsel %vm349, %v345, %v353
  %v358 = vsel %vm350, %v346, %v354
  %v359 = vsel %vm351, %v347, %v355
  %v360 = vsel %vm352, %v348, %v356
  %v361 = vmul.f32 %v56, %v325
  %v362 = vmul.f32 %v57, %v328
  %v363 = vmul.f32 %v58, %v331
  %v364 = vmul.f32 %v59, %v334
  %369 = vrot.lane.b32.xlu0 %v325, 64
  %v370 = vpop.permute.xlu0 %369
  %371 = vrot.lane.b32.xlu0 %v328, 64
  %v372 = vpop.permute.xlu0 %371
  %373 = vrot.lane.b32.xlu0 %v331, 64
  %v374 = vpop.permute.xlu0 %373
  %375 = vrot.lane.b32.xlu0 %v334, 64
  %v376 = vpop.permute.xlu0 %375
  %v381 = vadd.f32 %v361, %v370
  %v382 = vadd.f32 %v362, %v372
  %v383 = vadd.f32 %v363, %v374
  %v384 = vadd.f32 %v364, %v376
  %vm385 = vcmp.gt.f32.partialorder %v381, 0.0
  %vm386 = vcmp.gt.f32.partialorder %v382, 0.0
  %vm387 = vcmp.gt.f32.partialorder %v383, 0.0
  %vm388 = vcmp.gt.f32.partialorder %v384, 0.0
  %v389 = vmul.f32 %v381, 0.01
  %v390 = vmul.f32 %v382, 0.01
  %v391 = vmul.f32 %v383, 0.01
  %v392 = vmul.f32 %v384, 0.01
  %v393 = vsel %vm385, %v381, %v389
  %v394 = vsel %vm386, %v382, %v390
  %v395 = vsel %vm387, %v383, %v391
  %v396 = vsel %vm388, %v384, %v392
  %401 = vrot.lane.b32.xlu0 %v393, 64
  %v402 = vpop.permute.xlu0 %401
  %403 = vrot.lane.b32.xlu0 %v394, 64
  %v404 = vpop.permute.xlu0 %403
  %405 = vrot.lane.b32.xlu0 %v395, 64
  %v406 = vpop.permute.xlu0 %405
  %407 = vrot.lane.b32.xlu0 %v396, 64
  %v408 = vpop.permute.xlu0 %407
  %v413 = vsel %vm80, %v357, %v402
  %v414 = vsel %vm80, %v358, %v404
  %v415 = vsel %vm80, %v359, %v406
  %v416 = vsel %vm80, %v360, %v408
  %v417 = vld [vmem:[%s5] sm:$0xff]
  %v418 = vld [vmem:[%s5 + $0x8] sm:$0xff]
  %v419 = vld [vmem:[%s5 + $0x10] sm:$0xff]
  %v420 = vld [vmem:[%s5 + $0x18] sm:$0xff]
  %v421 = vld [vmem:[%s5 + $0x20] sm:$0xff]
  %v422 = vld [vmem:[%s5 + $0x28] sm:$0xff]
  %v423 = vld [vmem:[%s5 + $0x30] sm:$0xff]
  %v424 = vld [vmem:[%s5 + $0x38] sm:$0xff]
  %v426 = vsel %vm86, %v417, 0
  %v429 = vsel %vm86, %v418, 0
  %v432 = vsel %vm86, %v419, 0
  %v435 = vsel %vm86, %v420, 0
  %v438 = vsel %vm86, %v421, 0
  %v441 = vsel %vm86, %v422, 0
  %v444 = vsel %vm86, %v423, 0
  %v447 = vsel %vm86, %v424, 0
  %449 = vmatpush.msra.mxu0 0.0
  %450 = vmatpush.msra.mxu0 0.0
  %451 = vmatpush.msra.mxu0 0.0
  %452 = vmatpush.msra.mxu0 0.0
  %453 = vmatpush.msra.mxu0 0.0
  %454 = vmatpush.msra.mxu0 0.0
  %455 = vmatpush.msra.mxu0 0.0
  %456 = vmatpush.msra.mxu0 0.0
  %457 = vmatpush.msra.mxu0 0.0
  %458 = vmatpush.msra.mxu0 0.0
  %459 = vmatpush.msra.mxu0 0.0
  %460 = vmatpush.msra.mxu0 0.0
  %461 = vmatpush.msra.mxu0 %v416
  %462 = vmatpush.msra.mxu0 %v415
  %463 = vmatpush.msra.mxu0 %v414
  %464 = vmatpush.msra.mxu0 %v413
  %465 = vmatmul.f32.gmra.mxu0 %v426
  %v466 = vpop.f32.mrf.mxu0
  %v467 = vadd.f32 0.0, %v466
  %468 = vmatmul.f32.gmra.mxu0 %v429
  %v469 = vpop.f32.mrf.mxu0
  %v470 = vadd.f32 0.0, %v469
  %471 = vmatmul.f32.gmra.mxu0 %v432
  %v472 = vpop.f32.mrf.mxu0
  %v473 = vadd.f32 0.0, %v472
  %474 = vmatmul.f32.gmra.mxu0 %v435
  %v475 = vpop.f32.mrf.mxu0
  %v476 = vadd.f32 0.0, %v475
  %477 = vmatmul.f32.gmra.mxu0 %v438
  %v478 = vpop.f32.mrf.mxu0
  %v479 = vadd.f32 0.0, %v478
  %480 = vmatmul.f32.gmra.mxu0 %v441
  %v481 = vpop.f32.mrf.mxu0
  %v482 = vadd.f32 0.0, %v481
  %483 = vmatmul.f32.gmra.mxu0 %v444
  %v484 = vpop.f32.mrf.mxu0
  %v485 = vadd.f32 0.0, %v484
  %486 = vmatmul.f32.gmra.mxu0 %v447
  %v487 = vpop.f32.mrf.mxu0
  %v488 = vadd.f32 0.0, %v487
  %489 = vdwg.mxu0
  %v490 = vld [vmem:[%s6] sm:$0xff]
  %v491 = vld [vmem:[%s6 + $0x8] sm:$0xff]
  %v492 = vld [vmem:[%s6 + $0x10] sm:$0xff]
  %v493 = vld [vmem:[%s6 + $0x18] sm:$0xff]
  %v494 = vld [vmem:[%s6 + $0x20] sm:$0xff]
  %v495 = vld [vmem:[%s6 + $0x28] sm:$0xff]
  %v496 = vld [vmem:[%s6 + $0x30] sm:$0xff]
  %v497 = vld [vmem:[%s6 + $0x38] sm:$0xff]
  %v498 = vld [vmem:[%s6 + $0x40] sm:$0xff]
  %v499 = vld [vmem:[%s6 + $0x48] sm:$0xff]
  %v500 = vld [vmem:[%s6 + $0x50] sm:$0xff]
  %v501 = vld [vmem:[%s6 + $0x58] sm:$0xff]
  %v502 = vld [vmem:[%s6 + $0x60] sm:$0xff]
  %v503 = vld [vmem:[%s6 + $0x68] sm:$0xff]
  %v504 = vld [vmem:[%s6 + $0x70] sm:$0xff]
  %v505 = vld [vmem:[%s6 + $0x78] sm:$0xff]
  %v506 = vld [vmem:[%s6 + $0x80] sm:$0xff]
  %v507 = vld [vmem:[%s6 + $0x88] sm:$0xff]
  %v508 = vld [vmem:[%s6 + $0x90] sm:$0xff]
  %v509 = vld [vmem:[%s6 + $0x98] sm:$0xff]
  %v510 = vld [vmem:[%s6 + $0xa0] sm:$0xff]
  %v511 = vld [vmem:[%s6 + $0xa8] sm:$0xff]
  %v512 = vld [vmem:[%s6 + $0xb0] sm:$0xff]
  %v513 = vld [vmem:[%s6 + $0xb8] sm:$0xff]
  %v514 = vld [vmem:[%s6 + $0xc0] sm:$0xff]
  %v515 = vld [vmem:[%s6 + $0xc8] sm:$0xff]
  %v516 = vld [vmem:[%s6 + $0xd0] sm:$0xff]
  %v517 = vld [vmem:[%s6 + $0xd8] sm:$0xff]
  %v518 = vld [vmem:[%s6 + $0xe0] sm:$0xff]
  %v519 = vld [vmem:[%s6 + $0xe8] sm:$0xff]
  %v520 = vld [vmem:[%s6 + $0xf0] sm:$0xff]
  %v521 = vld [vmem:[%s6 + $0xf8] sm:$0xff]
  %v522 = vld [vmem:[%s6 + $0x100] sm:$0xff]
  %v523 = vld [vmem:[%s6 + $0x108] sm:$0xff]
  %v524 = vld [vmem:[%s6 + $0x110] sm:$0xff]
  %v525 = vld [vmem:[%s6 + $0x118] sm:$0xff]
  %v526 = vld [vmem:[%s6 + $0x120] sm:$0xff]
  %v527 = vld [vmem:[%s6 + $0x128] sm:$0xff]
  %v528 = vld [vmem:[%s6 + $0x130] sm:$0xff]
  %v529 = vld [vmem:[%s6 + $0x138] sm:$0xff]
  %v530 = vld [vmem:[%s6 + $0x140] sm:$0xff]
  %v531 = vld [vmem:[%s6 + $0x148] sm:$0xff]
  %v532 = vld [vmem:[%s6 + $0x150] sm:$0xff]
  %v533 = vld [vmem:[%s6 + $0x158] sm:$0xff]
  %v534 = vld [vmem:[%s6 + $0x160] sm:$0xff]
  %v535 = vld [vmem:[%s6 + $0x168] sm:$0xff]
  %v536 = vld [vmem:[%s6 + $0x170] sm:$0xff]
  %v537 = vld [vmem:[%s6 + $0x178] sm:$0xff]
  %v538 = vld [vmem:[%s6 + $0x180] sm:$0xff]
  %v539 = vld [vmem:[%s6 + $0x188] sm:$0xff]
  %v540 = vld [vmem:[%s6 + $0x190] sm:$0xff]
  %v541 = vld [vmem:[%s6 + $0x198] sm:$0xff]
  %v542 = vld [vmem:[%s6 + $0x1a0] sm:$0xff]
  %v543 = vld [vmem:[%s6 + $0x1a8] sm:$0xff]
  %v544 = vld [vmem:[%s6 + $0x1b0] sm:$0xff]
  %v545 = vld [vmem:[%s6 + $0x1b8] sm:$0xff]
  %v546 = vld [vmem:[%s6 + $0x1c0] sm:$0xff]
  %v547 = vld [vmem:[%s6 + $0x1c8] sm:$0xff]
  %v548 = vld [vmem:[%s6 + $0x1d0] sm:$0xff]
  %v549 = vld [vmem:[%s6 + $0x1d8] sm:$0xff]
  %v550 = vld [vmem:[%s6 + $0x1e0] sm:$0xff]
  %v551 = vld [vmem:[%s6 + $0x1e8] sm:$0xff]
  %v552 = vld [vmem:[%s6 + $0x1f0] sm:$0xff]
  %v553 = vld [vmem:[%s6 + $0x1f8] sm:$0xff]
  %v554 = vld [vmem:[%s6 + $0x200] sm:$0xff]
  %v555 = vld [vmem:[%s6 + $0x208] sm:$0xff]
  %v556 = vld [vmem:[%s6 + $0x210] sm:$0xff]
  %v557 = vld [vmem:[%s6 + $0x218] sm:$0xff]
  %v558 = vld [vmem:[%s6 + $0x220] sm:$0xff]
  %v559 = vld [vmem:[%s6 + $0x228] sm:$0xff]
  %v560 = vld [vmem:[%s6 + $0x230] sm:$0xff]
  %v561 = vld [vmem:[%s6 + $0x238] sm:$0xff]
  %v562 = vld [vmem:[%s6 + $0x240] sm:$0xff]
  %v563 = vld [vmem:[%s6 + $0x248] sm:$0xff]
  %v564 = vld [vmem:[%s6 + $0x250] sm:$0xff]
  %v565 = vld [vmem:[%s6 + $0x258] sm:$0xff]
  %v566 = vld [vmem:[%s6 + $0x260] sm:$0xff]
  %v567 = vld [vmem:[%s6 + $0x268] sm:$0xff]
  %v568 = vld [vmem:[%s6 + $0x270] sm:$0xff]
  %v569 = vld [vmem:[%s6 + $0x278] sm:$0xff]
  %v570 = vld [vmem:[%s6 + $0x280] sm:$0xff]
  %v571 = vld [vmem:[%s6 + $0x288] sm:$0xff]
  %v572 = vld [vmem:[%s6 + $0x290] sm:$0xff]
  %v573 = vld [vmem:[%s6 + $0x298] sm:$0xff]
  %v574 = vld [vmem:[%s6 + $0x2a0] sm:$0xff]
  %v575 = vld [vmem:[%s6 + $0x2a8] sm:$0xff]
  %v576 = vld [vmem:[%s6 + $0x2b0] sm:$0xff]
  %v577 = vld [vmem:[%s6 + $0x2b8] sm:$0xff]
  %v578 = vld [vmem:[%s6 + $0x2c0] sm:$0xff]
  %v579 = vld [vmem:[%s6 + $0x2c8] sm:$0xff]
  %v580 = vld [vmem:[%s6 + $0x2d0] sm:$0xff]
  %v581 = vld [vmem:[%s6 + $0x2d8] sm:$0xff]
  %v582 = vld [vmem:[%s6 + $0x2e0] sm:$0xff]
  %v583 = vld [vmem:[%s6 + $0x2e8] sm:$0xff]
  %v584 = vld [vmem:[%s6 + $0x2f0] sm:$0xff]
  %v585 = vld [vmem:[%s6 + $0x2f8] sm:$0xff]
  %v586 = vld [vmem:[%s7] sm:$0x3]
  %v588 = vperm.slane %v586, 0
  %v589 = vperm.slane %v586, 1
  %592 = vmatpush.msra.mxu0 %v520
  %593 = vmatpush.msra.mxu0 %v518
  %594 = vmatpush.msra.mxu0 %v516
  %595 = vmatpush.msra.mxu0 %v514
  %596 = vmatpush.msra.mxu0 %v512
  %597 = vmatpush.msra.mxu0 %v510
  %598 = vmatpush.msra.mxu0 %v508
  %599 = vmatpush.msra.mxu0 %v506
  %600 = vmatpush.msra.mxu0 %v504
  %601 = vmatpush.msra.mxu0 %v502
  %602 = vmatpush.msra.mxu0 %v500
  %603 = vmatpush.msra.mxu0 %v498
  %604 = vmatpush.msra.mxu0 %v496
  %605 = vmatpush.msra.mxu0 %v494
  %606 = vmatpush.msra.mxu0 %v492
  %607 = vmatpush.msra.mxu0 %v490
  %608 = vmatmul.f32.gmra.mxu0 %v413
  %v609 = vpop.f32.mrf.mxu0
  %v610 = vadd.f32 %v588, %v609
  %611 = vmatmul.f32.gmra.mxu0 %v414
  %v612 = vpop.f32.mrf.mxu0
  %v613 = vadd.f32 %v588, %v612
  %614 = vmatmul.f32.gmra.mxu0 %v415
  %v615 = vpop.f32.mrf.mxu0
  %v616 = vadd.f32 %v588, %v615
  %617 = vmatmul.f32.gmra.mxu0 %v416
  %v618 = vpop.f32.mrf.mxu0
  %v619 = vadd.f32 %v588, %v618
  %620 = vdwg.mxu0
  %621 = vmatpush.msra.mxu0 %v552
  %622 = vmatpush.msra.mxu0 %v550
  %623 = vmatpush.msra.mxu0 %v548
  %624 = vmatpush.msra.mxu0 %v546
  %625 = vmatpush.msra.mxu0 %v544
  %626 = vmatpush.msra.mxu0 %v542
  %627 = vmatpush.msra.mxu0 %v540
  %628 = vmatpush.msra.mxu0 %v538
  %629 = vmatpush.msra.mxu0 %v536
  %630 = vmatpush.msra.mxu0 %v534
  %631 = vmatpush.msra.mxu0 %v532
  %632 = vmatpush.msra.mxu0 %v530
  %633 = vmatpush.msra.mxu0 %v528
  %634 = vmatpush.msra.mxu0 %v526
  %635 = vmatpush.msra.mxu0 %v524
  %636 = vmatpush.msra.mxu0 %v522
  %637 = vmatmul.f32.gmra.mxu0 %v467
  %v638 = vpop.f32.mrf.mxu0
  %v639 = vadd.f32 %v610, %v638
  %640 = vmatmul.f32.gmra.mxu0 %v470
  %v641 = vpop.f32.mrf.mxu0
  %v642 = vadd.f32 %v613, %v641
  %643 = vmatmul.f32.gmra.mxu0 %v473
  %v644 = vpop.f32.mrf.mxu0
  %v645 = vadd.f32 %v616, %v644
  %646 = vmatmul.f32.gmra.mxu0 %v476
  %v647 = vpop.f32.mrf.mxu0
  %v648 = vadd.f32 %v619, %v647
  %649 = vdwg.mxu0
  %650 = vmatpush.msra.mxu0 %v584
  %651 = vmatpush.msra.mxu0 %v582
  %652 = vmatpush.msra.mxu0 %v580
  %653 = vmatpush.msra.mxu0 %v578
  %654 = vmatpush.msra.mxu0 %v576
  %655 = vmatpush.msra.mxu0 %v574
  %656 = vmatpush.msra.mxu0 %v572
  %657 = vmatpush.msra.mxu0 %v570
  %658 = vmatpush.msra.mxu0 %v568
  %659 = vmatpush.msra.mxu0 %v566
  %660 = vmatpush.msra.mxu0 %v564
  %661 = vmatpush.msra.mxu0 %v562
  %662 = vmatpush.msra.mxu0 %v560
  %663 = vmatpush.msra.mxu0 %v558
  %664 = vmatpush.msra.mxu0 %v556
  %665 = vmatpush.msra.mxu0 %v554
  %666 = vmatmul.f32.gmra.mxu0 %v479
  %v667 = vpop.f32.mrf.mxu0
  %v668 = vadd.f32 %v639, %v667
  %669 = vmatmul.f32.gmra.mxu0 %v482
  %v670 = vpop.f32.mrf.mxu0
  %v671 = vadd.f32 %v642, %v670
  %672 = vmatmul.f32.gmra.mxu0 %v485
  %v673 = vpop.f32.mrf.mxu0
  %v674 = vadd.f32 %v645, %v673
  %675 = vmatmul.f32.gmra.mxu0 %v488
  %v676 = vpop.f32.mrf.mxu0
  %v677 = vadd.f32 %v648, %v676
  %678 = vdwg.mxu0
  %679 = vmatpush.msra.mxu0 %v521
  %680 = vmatpush.msra.mxu0 %v519
  %681 = vmatpush.msra.mxu0 %v517
  %682 = vmatpush.msra.mxu0 %v515
  %683 = vmatpush.msra.mxu0 %v513
  %684 = vmatpush.msra.mxu0 %v511
  %685 = vmatpush.msra.mxu0 %v509
  %686 = vmatpush.msra.mxu0 %v507
  %687 = vmatpush.msra.mxu0 %v505
  %688 = vmatpush.msra.mxu0 %v503
  %689 = vmatpush.msra.mxu0 %v501
  %690 = vmatpush.msra.mxu0 %v499
  %691 = vmatpush.msra.mxu0 %v497
  %692 = vmatpush.msra.mxu0 %v495
  %693 = vmatpush.msra.mxu0 %v493
  %694 = vmatpush.msra.mxu0 %v491
  %695 = vmatmul.f32.gmra.mxu0 %v413
  %v696 = vpop.f32.mrf.mxu0
  %v697 = vadd.f32 %v589, %v696
  %698 = vmatmul.f32.gmra.mxu0 %v414
  %v699 = vpop.f32.mrf.mxu0
  %v700 = vadd.f32 %v589, %v699
  %701 = vmatmul.f32.gmra.mxu0 %v415
  %v702 = vpop.f32.mrf.mxu0
  %v703 = vadd.f32 %v589, %v702
  %704 = vmatmul.f32.gmra.mxu0 %v416
  %v705 = vpop.f32.mrf.mxu0
  %v706 = vadd.f32 %v589, %v705
  %707 = vdwg.mxu0
  %708 = vmatpush.msra.mxu0 %v553
  %709 = vmatpush.msra.mxu0 %v551
  %710 = vmatpush.msra.mxu0 %v549
  %711 = vmatpush.msra.mxu0 %v547
  %712 = vmatpush.msra.mxu0 %v545
  %713 = vmatpush.msra.mxu0 %v543
  %714 = vmatpush.msra.mxu0 %v541
  %715 = vmatpush.msra.mxu0 %v539
  %716 = vmatpush.msra.mxu0 %v537
  %717 = vmatpush.msra.mxu0 %v535
  %718 = vmatpush.msra.mxu0 %v533
  %719 = vmatpush.msra.mxu0 %v531
  %720 = vmatpush.msra.mxu0 %v529
  %721 = vmatpush.msra.mxu0 %v527
  %722 = vmatpush.msra.mxu0 %v525
  %723 = vmatpush.msra.mxu0 %v523
  %724 = vmatmul.f32.gmra.mxu0 %v467
  %v725 = vpop.f32.mrf.mxu0
  %v726 = vadd.f32 %v697, %v725
  %727 = vmatmul.f32.gmra.mxu0 %v470
  %v728 = vpop.f32.mrf.mxu0
  %v729 = vadd.f32 %v700, %v728
  %730 = vmatmul.f32.gmra.mxu0 %v473
  %v731 = vpop.f32.mrf.mxu0
  %v732 = vadd.f32 %v703, %v731
  %733 = vmatmul.f32.gmra.mxu0 %v476
  %v734 = vpop.f32.mrf.mxu0
  %v735 = vadd.f32 %v706, %v734
  %736 = vdwg.mxu0
  %737 = vmatpush.msra.mxu0 %v585
  %738 = vmatpush.msra.mxu0 %v583
  %739 = vmatpush.msra.mxu0 %v581
  %740 = vmatpush.msra.mxu0 %v579
  %741 = vmatpush.msra.mxu0 %v577
  %742 = vmatpush.msra.mxu0 %v575
  %743 = vmatpush.msra.mxu0 %v573
  %744 = vmatpush.msra.mxu0 %v571
  %745 = vmatpush.msra.mxu0 %v569
  %746 = vmatpush.msra.mxu0 %v567
  %747 = vmatpush.msra.mxu0 %v565
  %748 = vmatpush.msra.mxu0 %v563
  %749 = vmatpush.msra.mxu0 %v561
  %750 = vmatpush.msra.mxu0 %v559
  %751 = vmatpush.msra.mxu0 %v557
  %752 = vmatpush.msra.mxu0 %v555
  %753 = vmatmul.f32.gmra.mxu0 %v479
  %v754 = vpop.f32.mrf.mxu0
  %v755 = vadd.f32 %v726, %v754
  %756 = vmatmul.f32.gmra.mxu0 %v482
  %v757 = vpop.f32.mrf.mxu0
  %v758 = vadd.f32 %v729, %v757
  %759 = vmatmul.f32.gmra.mxu0 %v485
  %v760 = vpop.f32.mrf.mxu0
  %v761 = vadd.f32 %v732, %v760
  %762 = vmatmul.f32.gmra.mxu0 %v488
  %v763 = vpop.f32.mrf.mxu0
  %v764 = vadd.f32 %v735, %v763
  %765 = vdwg.mxu0
  %v766 = vadd.f32 %v668, %v755
  %v767 = vadd.f32 %v671, %v758
  %v768 = vadd.f32 %v674, %v761
  %v769 = vadd.f32 %v677, %v764
  %v770 = vld [vmem:[%s8] sm:$0xff]
  %v772 = vsel %vm86, %v770, 0
  %774 = vmatpush.msra.mxu0 0.0
  %775 = vmatpush.msra.mxu0 0.0
  %776 = vmatpush.msra.mxu0 0.0
  %777 = vmatpush.msra.mxu0 0.0
  %778 = vmatpush.msra.mxu0 0.0
  %779 = vmatpush.msra.mxu0 0.0
  %780 = vmatpush.msra.mxu0 0.0
  %781 = vmatpush.msra.mxu0 0.0
  %782 = vmatpush.msra.mxu0 0.0
  %783 = vmatpush.msra.mxu0 0.0
  %784 = vmatpush.msra.mxu0 0.0
  %785 = vmatpush.msra.mxu0 0.0
  %786 = vmatpush.msra.mxu0 %v769
  %787 = vmatpush.msra.mxu0 %v768
  %788 = vmatpush.msra.mxu0 %v767
  %789 = vmatpush.msra.mxu0 %v766
  %790 = vmatmul.f32.gmra.mxu0 %v772
  %v791 = vpop.f32.mrf.mxu0
  %v792 = vadd.f32 0.0, %v791
  %793 = vdwg.mxu0
  %v794 = vld [vmem:[%s9] sm:$0xff]
  %v795 = vld [vmem:[%s9 + $0x8] sm:$0xff]
  %v796 = vld [vmem:[%s9 + $0x10] sm:$0xff]
  %v797 = vld [vmem:[%s9 + $0x18] sm:$0xff]
  %v798 = vld [vmem:[%s9 + $0x20] sm:$0xff]
  %v799 = vld [vmem:[%s9 + $0x28] sm:$0xff]
  %v800 = vld [vmem:[%s9 + $0x30] sm:$0xff]
  %v801 = vld [vmem:[%s9 + $0x38] sm:$0xff]
  %v802 = vld [vmem:[%s9 + $0x40] sm:$0xff]
  %v803 = vld [vmem:[%s9 + $0x48] sm:$0xff]
  %v804 = vld [vmem:[%s9 + $0x50] sm:$0xff]
  %v805 = vld [vmem:[%s9 + $0x58] sm:$0xff]
  %v806 = vld [vmem:[%s9 + $0x60] sm:$0xff]
  %v807 = vld [vmem:[%s9 + $0x68] sm:$0xff]
  %v808 = vld [vmem:[%s9 + $0x70] sm:$0xff]
  %v809 = vld [vmem:[%s9 + $0x78] sm:$0xff]
  %810 = vmatpush.msra.mxu0 %v809
  %811 = vmatpush.msra.mxu0 %v808
  %812 = vmatpush.msra.mxu0 %v807
  %813 = vmatpush.msra.mxu0 %v806
  %814 = vmatpush.msra.mxu0 %v805
  %815 = vmatpush.msra.mxu0 %v804
  %816 = vmatpush.msra.mxu0 %v803
  %817 = vmatpush.msra.mxu0 %v802
  %818 = vmatpush.msra.mxu0 %v801
  %819 = vmatpush.msra.mxu0 %v800
  %820 = vmatpush.msra.mxu0 %v799
  %821 = vmatpush.msra.mxu0 %v798
  %822 = vmatpush.msra.mxu0 %v797
  %823 = vmatpush.msra.mxu0 %v796
  %824 = vmatpush.msra.mxu0 %v795
  %825 = vmatpush.msra.mxu0 %v794
  %826 = vmatmul.f32.gmra.mxu0 %v792
  %v827 = vpop.f32.mrf.mxu0
  %v828 = vadd.f32 0.0, %v827
  %829 = vdwg.mxu0
  %v830 = vld [vmem:[%s10] sm:$0xff]
  %v831 = vmul.f32 %v828, %v830
  %v832 = vld [vmem:[%s11] sm:$0x3]
  %v834 = vsel %vm228, %v832, 0
  %836 = vmatpush.msra.mxu0 0.0
  %837 = vmatpush.msra.mxu0 0.0
  %838 = vmatpush.msra.mxu0 0.0
  %839 = vmatpush.msra.mxu0 0.0
  %840 = vmatpush.msra.mxu0 0.0
  %841 = vmatpush.msra.mxu0 0.0
  %842 = vmatpush.msra.mxu0 0.0
  %843 = vmatpush.msra.mxu0 0.0
  %844 = vmatpush.msra.mxu0 0.0
  %845 = vmatpush.msra.mxu0 0.0
  %846 = vmatpush.msra.mxu0 0.0
  %847 = vmatpush.msra.mxu0 0.0
  %848 = vmatpush.msra.mxu0 0.0
  %849 = vmatpush.msra.mxu0 0.0
  %850 = vmatpush.msra.mxu0 0.0
  %851 = vmatpush.msra.mxu0 %v831
  %852 = vmatmul.f32.gmra.mxu0 %v834
  %v853 = vpop.f32.mrf.mxu0
  %v854 = vadd.f32 0.0, %v853
  %855 = vdwg.mxu0
  %v856 = vld [vmem:[%s12] sm:$0xff]
  %v857 = vld [vmem:[%s12 + $0x8] sm:$0xff]
  %v858 = vld [vmem:[%s12 + $0x10] sm:$0xff]
  %v859 = vld [vmem:[%s12 + $0x18] sm:$0xff]
  %v860 = vld [vmem:[%s12 + $0x20] sm:$0xff]
  %v861 = vld [vmem:[%s12 + $0x28] sm:$0xff]
  %v862 = vld [vmem:[%s12 + $0x30] sm:$0xff]
  %v863 = vld [vmem:[%s12 + $0x38] sm:$0xff]
  %v864 = vld [vmem:[%s12 + $0x40] sm:$0xff]
  %v865 = vld [vmem:[%s12 + $0x48] sm:$0xff]
  %v866 = vld [vmem:[%s12 + $0x50] sm:$0xff]
  %v867 = vld [vmem:[%s12 + $0x58] sm:$0xff]
  %v868 = vld [vmem:[%s12 + $0x60] sm:$0xff]
  %v869 = vld [vmem:[%s12 + $0x68] sm:$0xff]
  %v870 = vld [vmem:[%s12 + $0x70] sm:$0xff]
  %v871 = vld [vmem:[%s12 + $0x78] sm:$0xff]
  %872 = vmatpush.msra.mxu0 %v871
  %873 = vmatpush.msra.mxu0 %v870
  %874 = vmatpush.msra.mxu0 %v869
  %875 = vmatpush.msra.mxu0 %v868
  %876 = vmatpush.msra.mxu0 %v867
  %877 = vmatpush.msra.mxu0 %v866
  %878 = vmatpush.msra.mxu0 %v865
  %879 = vmatpush.msra.mxu0 %v864
  %880 = vmatpush.msra.mxu0 %v863
  %881 = vmatpush.msra.mxu0 %v862
  %882 = vmatpush.msra.mxu0 %v861
  %883 = vmatpush.msra.mxu0 %v860
  %884 = vmatpush.msra.mxu0 %v859
  %885 = vmatpush.msra.mxu0 %v858
  %886 = vmatpush.msra.mxu0 %v857
  %887 = vmatpush.msra.mxu0 %v856
  %888 = vmatmul.f32.gmra.mxu0 %v854
  %v889 = vpop.f32.mrf.mxu0
  %v890 = vadd.f32 0.0, %v889
  %891 = vdwg.mxu0
  %v892 = vmax.f32 %v890, 0.0
  %v893 = vld [vmem:[%s13] sm:$0xff]
  %v894 = vld [vmem:[%s13 + $0x8] sm:$0xff]
  %v895 = vld [vmem:[%s14] sm:$0x3]
  %v897 = vperm.slane %v895, 0
  %v898 = vperm.slane %v895, 1
  %v902 = vsel %vm228, %v892, 0
  %904 = vmatpush.msra.mxu0 0.0
  %905 = vmatpush.msra.mxu0 0.0
  %906 = vmatpush.msra.mxu0 0.0
  %907 = vmatpush.msra.mxu0 0.0
  %908 = vmatpush.msra.mxu0 0.0
  %909 = vmatpush.msra.mxu0 0.0
  %910 = vmatpush.msra.mxu0 0.0
  %911 = vmatpush.msra.mxu0 0.0
  %912 = vmatpush.msra.mxu0 0.0
  %913 = vmatpush.msra.mxu0 0.0
  %914 = vmatpush.msra.mxu0 0.0
  %915 = vmatpush.msra.mxu0 0.0
  %916 = vmatpush.msra.mxu0 0.0
  %917 = vmatpush.msra.mxu0 0.0
  %918 = vmatpush.msra.mxu0 0.0
  %919 = vmatpush.msra.mxu0 %v893
  %920 = vmatmul.f32.gmra.mxu0 %v902
  %v921 = vpop.f32.mrf.mxu0
  %v922 = vadd.f32 %v897, %v921
  %923 = vdwg.mxu0
  %924 = vmatpush.msra.mxu0 0.0
  %925 = vmatpush.msra.mxu0 0.0
  %926 = vmatpush.msra.mxu0 0.0
  %927 = vmatpush.msra.mxu0 0.0
  %928 = vmatpush.msra.mxu0 0.0
  %929 = vmatpush.msra.mxu0 0.0
  %930 = vmatpush.msra.mxu0 0.0
  %931 = vmatpush.msra.mxu0 0.0
  %932 = vmatpush.msra.mxu0 0.0
  %933 = vmatpush.msra.mxu0 0.0
  %934 = vmatpush.msra.mxu0 0.0
  %935 = vmatpush.msra.mxu0 0.0
  %936 = vmatpush.msra.mxu0 0.0
  %937 = vmatpush.msra.mxu0 0.0
  %938 = vmatpush.msra.mxu0 0.0
  %939 = vmatpush.msra.mxu0 %v894
  %940 = vmatmul.f32.gmra.mxu0 %v902
  %v941 = vpop.f32.mrf.mxu0
  %v942 = vadd.f32 %v898, %v941
  %943 = vdwg.mxu0
  %v944 = vmax.f32 %v922, %v942
  %v945 = vsub.f32 %v922, %v944
  %v946 = vmul.f32 %v945, 1.442695
  %v947 = vpow.pop %v946
  %v948 = vsub.f32 %v942, %v944
  %v949 = vmul.f32 %v948, 1.442695
  %v950 = vpow.pop %v949
  %v951 = vadd.f32 %v947, %v950
  %v952 = vrcp.pop %v951
  %v953 = vmul.f32 %v947, %v952
  %v954 = vmul.f32 %v950, %v952
  %v956 = vsel %vm303, %v953, 0
  %v959 = vsel %vm303, %v954, 0
  %961 = vmatpush.msra.mxu0 0.0
  %962 = vmatpush.msra.mxu0 0.0
  %963 = vmatpush.msra.mxu0 0.0
  %964 = vmatpush.msra.mxu0 0.0
  %965 = vmatpush.msra.mxu0 0.0
  %966 = vmatpush.msra.mxu0 0.0
  %967 = vmatpush.msra.mxu0 0.0
  %968 = vmatpush.msra.mxu0 0.0
  %969 = vmatpush.msra.mxu0 0.0
  %970 = vmatpush.msra.mxu0 0.0
  %971 = vmatpush.msra.mxu0 0.0
  %972 = vmatpush.msra.mxu0 0.0
  %973 = vmatpush.msra.mxu0 0.0
  %974 = vmatpush.msra.mxu0 0.0
  %975 = vmatpush.msra.mxu0 0.0
  %976 = vmatpush.msra.mxu0 %v956
  %977 = vmatmul.f32.gmra.mxu0 %v292
  %v978 = vpop.f32.mrf.mxu0
  %v979 = vadd.f32 0.0, %v978
  %980 = vmatmul.f32.gmra.mxu0 %v295
  %v981 = vpop.f32.mrf.mxu0
  %v982 = vadd.f32 0.0, %v981
  %983 = vmatmul.f32.gmra.mxu0 %v298
  %v984 = vpop.f32.mrf.mxu0
  %v985 = vadd.f32 0.0, %v984
  %986 = vmatmul.f32.gmra.mxu0 %v301
  %v987 = vpop.f32.mrf.mxu0
  %v988 = vadd.f32 0.0, %v987
  %989 = vdwg.mxu0
  %990 = vmatpush.msra.mxu0 0.0
  %991 = vmatpush.msra.mxu0 0.0
  %992 = vmatpush.msra.mxu0 0.0
  %993 = vmatpush.msra.mxu0 0.0
  %994 = vmatpush.msra.mxu0 0.0
  %995 = vmatpush.msra.mxu0 0.0
  %996 = vmatpush.msra.mxu0 0.0
  %997 = vmatpush.msra.mxu0 0.0
  %998 = vmatpush.msra.mxu0 0.0
  %999 = vmatpush.msra.mxu0 0.0
  %1000 = vmatpush.msra.mxu0 0.0
  %1001 = vmatpush.msra.mxu0 0.0
  %1002 = vmatpush.msra.mxu0 0.0
  %1003 = vmatpush.msra.mxu0 0.0
  %1004 = vmatpush.msra.mxu0 0.0
  %1005 = vmatpush.msra.mxu0 %v959
  %1006 = vmatmul.f32.gmra.mxu0 %v292
  %v1007 = vpop.f32.mrf.mxu0
  %v1008 = vadd.f32 0.0, %v1007
  %1009 = vmatmul.f32.gmra.mxu0 %v295
  %v1010 = vpop.f32.mrf.mxu0
  %v1011 = vadd.f32 0.0, %v1010
  %1012 = vmatmul.f32.gmra.mxu0 %v298
  %v1013 = vpop.f32.mrf.mxu0
  %v1014 = vadd.f32 0.0, %v1013
  %1015 = vmatmul.f32.gmra.mxu0 %v301
  %v1016 = vpop.f32.mrf.mxu0
  %v1017 = vadd.f32 0.0, %v1016
  %1018 = vdwg.mxu0
  %v1019 = vld [vmem:[%s15] sm:$0xff]
  %v1020 = vld [vmem:[%s15 + $0x8] sm:$0xff]
  %v1021 = vld [vmem:[%s15 + $0x10] sm:$0xff]
  %v1022 = vld [vmem:[%s15 + $0x18] sm:$0xff]
  %v1023 = vld [vmem:[%s15 + $0x20] sm:$0xff]
  %v1024 = vld [vmem:[%s15 + $0x28] sm:$0xff]
  %v1025 = vld [vmem:[%s15 + $0x30] sm:$0xff]
  %v1026 = vld [vmem:[%s15 + $0x38] sm:$0xff]
  %v1027 = vmul.f32 %v979, %v1019
  %v1028 = vmul.f32 %v1008, %v1020
  %v1029 = vmul.f32 %v982, %v1021
  %v1030 = vmul.f32 %v1011, %v1022
  %v1031 = vmul.f32 %v985, %v1023
  %v1032 = vmul.f32 %v1014, %v1024
  %v1033 = vmul.f32 %v988, %v1025
  %v1034 = vmul.f32 %v1017, %v1026
  %v1035 = vld [vmem:[%s16] sm:$0xff]
  %v1036 = vld [vmem:[%s16 + $0x8] sm:$0xff]
  %v1037 = vld [vmem:[%s16 + $0x10] sm:$0xff]
  %v1038 = vld [vmem:[%s16 + $0x18] sm:$0xff]
  %v1039 = vld [vmem:[%s16 + $0x20] sm:$0xff]
  %v1040 = vld [vmem:[%s16 + $0x28] sm:$0xff]
  %v1041 = vld [vmem:[%s16 + $0x30] sm:$0xff]
  %v1042 = vld [vmem:[%s16 + $0x38] sm:$0xff]
  %v1043 = vld [vmem:[%s16 + $0x40] sm:$0xff]
  %v1044 = vld [vmem:[%s16 + $0x48] sm:$0xff]
  %v1045 = vld [vmem:[%s16 + $0x50] sm:$0xff]
  %v1046 = vld [vmem:[%s16 + $0x58] sm:$0xff]
  %v1047 = vld [vmem:[%s16 + $0x60] sm:$0xff]
  %v1048 = vld [vmem:[%s16 + $0x68] sm:$0xff]
  %v1049 = vld [vmem:[%s16 + $0x70] sm:$0xff]
  %v1050 = vld [vmem:[%s16 + $0x78] sm:$0xff]
  %v1051 = vld [vmem:[%s16 + $0x80] sm:$0xff]
  %v1052 = vld [vmem:[%s16 + $0x88] sm:$0xff]
  %v1053 = vld [vmem:[%s16 + $0x90] sm:$0xff]
  %v1054 = vld [vmem:[%s16 + $0x98] sm:$0xff]
  %v1055 = vld [vmem:[%s16 + $0xa0] sm:$0xff]
  %v1056 = vld [vmem:[%s16 + $0xa8] sm:$0xff]
  %v1057 = vld [vmem:[%s16 + $0xb0] sm:$0xff]
  %v1058 = vld [vmem:[%s16 + $0xb8] sm:$0xff]
  %v1059 = vld [vmem:[%s16 + $0xc0] sm:$0xff]
  %v1060 = vld [vmem:[%s16 + $0xc8] sm:$0xff]
  %v1061 = vld [vmem:[%s16 + $0xd0] sm:$0xff]
  %v1062 = vld [vmem:[%s16 + $0xd8] sm:$0xff]
  %v1063 = vld [vmem:[%s16 + $0xe0] sm:$0xff]
  %v1064 = vld [vmem:[%s16 + $0xe8] sm:$0xff]
  %v1065 = vld [vmem:[%s16 + $0xf0] sm:$0xff]
  %v1066 = vld [vmem:[%s16 + $0xf8] sm:$0xff]
  %v1067 = vld [vmem:[%s16 + $0x100] sm:$0xff]
  %v1068 = vld [vmem:[%s16 + $0x108] sm:$0xff]
  %v1069 = vld [vmem:[%s16 + $0x110] sm:$0xff]
  %v1070 = vld [vmem:[%s16 + $0x118] sm:$0xff]
  %v1071 = vld [vmem:[%s16 + $0x120] sm:$0xff]
  %v1072 = vld [vmem:[%s16 + $0x128] sm:$0xff]
  %v1073 = vld [vmem:[%s16 + $0x130] sm:$0xff]
  %v1074 = vld [vmem:[%s16 + $0x138] sm:$0xff]
  %v1075 = vld [vmem:[%s16 + $0x140] sm:$0xff]
  %v1076 = vld [vmem:[%s16 + $0x148] sm:$0xff]
  %v1077 = vld [vmem:[%s16 + $0x150] sm:$0xff]
  %v1078 = vld [vmem:[%s16 + $0x158] sm:$0xff]
  %v1079 = vld [vmem:[%s16 + $0x160] sm:$0xff]
  %v1080 = vld [vmem:[%s16 + $0x168] sm:$0xff]
  %v1081 = vld [vmem:[%s16 + $0x170] sm:$0xff]
  %v1082 = vld [vmem:[%s16 + $0x178] sm:$0xff]
  %v1083 = vld [vmem:[%s16 + $0x180] sm:$0xff]
  %v1084 = vld [vmem:[%s16 + $0x188] sm:$0xff]
  %v1085 = vld [vmem:[%s16 + $0x190] sm:$0xff]
  %v1086 = vld [vmem:[%s16 + $0x198] sm:$0xff]
  %v1087 = vld [vmem:[%s16 + $0x1a0] sm:$0xff]
  %v1088 = vld [vmem:[%s16 + $0x1a8] sm:$0xff]
  %v1089 = vld [vmem:[%s16 + $0x1b0] sm:$0xff]
  %v1090 = vld [vmem:[%s16 + $0x1b8] sm:$0xff]
  %v1091 = vld [vmem:[%s16 + $0x1c0] sm:$0xff]
  %v1092 = vld [vmem:[%s16 + $0x1c8] sm:$0xff]
  %v1093 = vld [vmem:[%s16 + $0x1d0] sm:$0xff]
  %v1094 = vld [vmem:[%s16 + $0x1d8] sm:$0xff]
  %v1095 = vld [vmem:[%s16 + $0x1e0] sm:$0xff]
  %v1096 = vld [vmem:[%s16 + $0x1e8] sm:$0xff]
  %v1097 = vld [vmem:[%s16 + $0x1f0] sm:$0xff]
  %v1098 = vld [vmem:[%s16 + $0x1f8] sm:$0xff]
  %1099 = vmatpush.msra.mxu0 %v1065
  %1100 = vmatpush.msra.mxu0 %v1063
  %1101 = vmatpush.msra.mxu0 %v1061
  %1102 = vmatpush.msra.mxu0 %v1059
  %1103 = vmatpush.msra.mxu0 %v1057
  %1104 = vmatpush.msra.mxu0 %v1055
  %1105 = vmatpush.msra.mxu0 %v1053
  %1106 = vmatpush.msra.mxu0 %v1051
  %1107 = vmatpush.msra.mxu0 %v1049
  %1108 = vmatpush.msra.mxu0 %v1047
  %1109 = vmatpush.msra.mxu0 %v1045
  %1110 = vmatpush.msra.mxu0 %v1043
  %1111 = vmatpush.msra.mxu0 %v1041
  %1112 = vmatpush.msra.mxu0 %v1039
  %1113 = vmatpush.msra.mxu0 %v1037
  %1114 = vmatpush.msra.mxu0 %v1035
  %1115 = vmatmul.f32.gmra.mxu0 %v1027
  %v1116 = vpop.f32.mrf.mxu0
  %v1117 = vadd.f32 0.0, %v1116
  %1118 = vmatmul.f32.gmra.mxu0 %v1029
  %v1119 = vpop.f32.mrf.mxu0
  %v1120 = vadd.f32 0.0, %v1119
  %1121 = vmatmul.f32.gmra.mxu0 %v1031
  %v1122 = vpop.f32.mrf.mxu0
  %v1123 = vadd.f32 0.0, %v1122
  %1124 = vmatmul.f32.gmra.mxu0 %v1033
  %v1125 = vpop.f32.mrf.mxu0
  %v1126 = vadd.f32 0.0, %v1125
  %1127 = vdwg.mxu0
  %1128 = vmatpush.msra.mxu0 %v1097
  %1129 = vmatpush.msra.mxu0 %v1095
  %1130 = vmatpush.msra.mxu0 %v1093
  %1131 = vmatpush.msra.mxu0 %v1091
  %1132 = vmatpush.msra.mxu0 %v1089
  %1133 = vmatpush.msra.mxu0 %v1087
  %1134 = vmatpush.msra.mxu0 %v1085
  %1135 = vmatpush.msra.mxu0 %v1083
  %1136 = vmatpush.msra.mxu0 %v1081
  %1137 = vmatpush.msra.mxu0 %v1079
  %1138 = vmatpush.msra.mxu0 %v1077
  %1139 = vmatpush.msra.mxu0 %v1075
  %1140 = vmatpush.msra.mxu0 %v1073
  %1141 = vmatpush.msra.mxu0 %v1071
  %1142 = vmatpush.msra.mxu0 %v1069
  %1143 = vmatpush.msra.mxu0 %v1067
  %1144 = vmatmul.f32.gmra.mxu0 %v1028
  %v1145 = vpop.f32.mrf.mxu0
  %v1146 = vadd.f32 %v1117, %v1145
  %1147 = vmatmul.f32.gmra.mxu0 %v1030
  %v1148 = vpop.f32.mrf.mxu0
  %v1149 = vadd.f32 %v1120, %v1148
  %1150 = vmatmul.f32.gmra.mxu0 %v1032
  %v1151 = vpop.f32.mrf.mxu0
  %v1152 = vadd.f32 %v1123, %v1151
  %1153 = vmatmul.f32.gmra.mxu0 %v1034
  %v1154 = vpop.f32.mrf.mxu0
  %v1155 = vadd.f32 %v1126, %v1154
  %1156 = vdwg.mxu0
  %1157 = vmatpush.msra.mxu0 %v1066
  %1158 = vmatpush.msra.mxu0 %v1064
  %1159 = vmatpush.msra.mxu0 %v1062
  %1160 = vmatpush.msra.mxu0 %v1060
  %1161 = vmatpush.msra.mxu0 %v1058
  %1162 = vmatpush.msra.mxu0 %v1056
  %1163 = vmatpush.msra.mxu0 %v1054
  %1164 = vmatpush.msra.mxu0 %v1052
  %1165 = vmatpush.msra.mxu0 %v1050
  %1166 = vmatpush.msra.mxu0 %v1048
  %1167 = vmatpush.msra.mxu0 %v1046
  %1168 = vmatpush.msra.mxu0 %v1044
  %1169 = vmatpush.msra.mxu0 %v1042
  %1170 = vmatpush.msra.mxu0 %v1040
  %1171 = vmatpush.msra.mxu0 %v1038
  %1172 = vmatpush.msra.mxu0 %v1036
  %1173 = vmatmul.f32.gmra.mxu0 %v1027
  %v1174 = vpop.f32.mrf.mxu0
  %v1175 = vadd.f32 0.0, %v1174
  %1176 = vmatmul.f32.gmra.mxu0 %v1029
  %v1177 = vpop.f32.mrf.mxu0
  %v1178 = vadd.f32 0.0, %v1177
  %1179 = vmatmul.f32.gmra.mxu0 %v1031
  %v1180 = vpop.f32.mrf.mxu0
  %v1181 = vadd.f32 0.0, %v1180
  %1182 = vmatmul.f32.gmra.mxu0 %v1033
  %v1183 = vpop.f32.mrf.mxu0
  %v1184 = vadd.f32 0.0, %v1183
  %1185 = vdwg.mxu0
  %1186 = vmatpush.msra.mxu0 %v1098
  %1187 = vmatpush.msra.mxu0 %v1096
  %1188 = vmatpush.msra.mxu0 %v1094
  %1189 = vmatpush.msra.mxu0 %v1092
  %1190 = vmatpush.msra.mxu0 %v1090
  %1191 = vmatpush.msra.mxu0 %v1088
  %1192 = vmatpush.msra.mxu0 %v1086
  %1193 = vmatpush.msra.mxu0 %v1084
  %1194 = vmatpush.msra.mxu0 %v1082
  %1195 = vmatpush.msra.mxu0 %v1080
  %1196 = vmatpush.msra.mxu0 %v1078
  %1197 = vmatpush.msra.mxu0 %v1076
  %1198 = vmatpush.msra.mxu0 %v1074
  %1199 = vmatpush.msra.mxu0 %v1072
  %1200 = vmatpush.msra.mxu0 %v1070
  %1201 = vmatpush.msra.mxu0 %v1068
  %1202 = vmatmul.f32.gmra.mxu0 %v1028
  %v1203 = vpop.f32.mrf.mxu0
  %v1204 = vadd.f32 %v1175, %v1203
  %1205 = vmatmul.f32.gmra.mxu0 %v1030
  %v1206 = vpop.f32.mrf.mxu0
  %v1207 = vadd.f32 %v1178, %v1206
  %1208 = vmatmul.f32.gmra.mxu0 %v1032
  %v1209 = vpop.f32.mrf.mxu0
  %v1210 = vadd.f32 %v1181, %v1209
  %1211 = vmatmul.f32.gmra.mxu0 %v1034
  %v1212 = vpop.f32.mrf.mxu0
  %v1213 = vadd.f32 %v1184, %v1212
  %1214 = vdwg.mxu0
  %v1215 = vmul.f32 %v668, %v1146
  %v1216 = vmul.f32 %v755, %v1204
  %v1217 = vmul.f32 %v671, %v1149
  %v1218 = vmul.f32 %v758, %v1207
  %v1219 = vmul.f32 %v674, %v1152
  %v1220 = vmul.f32 %v761, %v1210
  %v1221 = vmul.f32 %v677, %v1155
  %v1222 = vmul.f32 %v764, %v1213
  %v1223 = vadd.f32 %v1215, %v1216
  %v1224 = vadd.f32 %v1217, %v1218
  %v1225 = vadd.f32 %v1219, %v1220
  %v1226 = vadd.f32 %v1221, %v1222
  %1227 = vst [vmem:[%s17] sm:$0xff] %v1223
  %1228 = vst [vmem:[%s17 + $0x8] sm:$0xff] %v1224
  %1229 = vst [vmem:[%s17 + $0x10] sm:$0xff] %v1225
  %1230 = vst [vmem:[%s17 + $0x18] sm:$0xff] %v1226
  // Predicated region
  $region70: #{selective_conv_forward.1} parent=0 // pred_check
    _
  $region71: #{selective_conv_forward.1} parent=0 // pred_check_branch
    %1232 = sbr.rel (0) target = $region73
  $region72: #{selective_conv_forward.1} parent=0 // pred_region
    _
  $region73: #{selective_conv_forward.1} parent=0 // pred_fallthru
    _
  // Predicated region
  $region74: #{selective_conv_forward.1} parent=0 // pred_check
    _
  $region75: #{selective_conv_forward.1} parent=0 // pred_check_branch
    %1234 = sbr.rel (0) target = $region77
  $region76: #{selective_conv_forward.1} parent=0 // pred_region
    _
  $region77: #{selective_conv_forward.1} parent=0 // pred_fallthru
    _

</llo_original>
